<compile_context>
chip_gen: v7x
topology: tpu7x:2x2x1
jax: 0.10.0
libtpu: 0.0.40
codegen_flags: <defaults>
</compile_context>

<pallas_src>
import math
import functools

import jax
import jax.numpy as jnp
from jax.experimental import pallas as pl

EPS = 1e-5


# ----------------------------- in-kernel helpers -----------------------------
def _mm(a, w):
    """MXU matmul: bf16 operands, f32 accumulate (elementwise math stays f32)."""
    return jnp.dot(a.astype(jnp.bfloat16), w.astype(jnp.bfloat16),
                   preferred_element_type=jnp.float32)


def _layernorm(x, w, b):
    mu = jnp.mean(x, axis=-1, keepdims=True)
    var = jnp.mean((x - mu) ** 2, axis=-1, keepdims=True)
    return (x - mu) * jax.lax.rsqrt(var + EPS) * w + b


def _gelu_tanh(x):
    c = math.sqrt(2.0 / math.pi)
    return 0.5 * x * (1.0 + jnp.tanh(c * (x + 0.044715 * x * x * x)))


# ------------------------------- fused kernel ---------------------------------
def cablock_kernel(q_ref, k_ref, v_ref,
                   ln1w_ref, ln1b_ref,
                   wqkv_ref, bqkv_ref,
                   wo_ref, bo_ref,
                   ln2w_ref, ln2b_ref,
                   wfc_ref, bfc_ref,
                   wpr_ref, bpr_ref,
                   o_ref, *, nhead):
    """Whole CABlock forward (all batch elements) in a single invocation."""
    B, Sq, D = q_ref.shape
    Skv = k_ref.shape[1]
    H = nhead
    hd = D // H
    Nq, Nkv = B * Sq, B * Skv

    # Fold batch into rows: all LN / projection / MLP math runs on [B*S, D]
    # slabs so every matmul / VPU op sees 2x the rows of the per-batch version.
    q2 = q_ref[...].reshape(Nq, D).astype(jnp.float32)
    k2 = k_ref[...].reshape(Nkv, D).astype(jnp.float32)
    v2 = v_ref[...].reshape(Nkv, D).astype(jnp.float32)

    # shared ln_1 on q, k, v (CABlock residual uses the *normalized* q)
    ln1w, ln1b = ln1w_ref[...], ln1b_ref[...]
    qn = _layernorm(q2, ln1w, ln1b)
    kn = _layernorm(k2, ln1w, ln1b)
    vn = _layernorm(v2, ln1w, ln1b)

    # ---- fused Q/K/V projection: one MXU push -----------------------------
    # rows [0:Nq] -> q-side, [Nq:Nq+Nkv] -> k-side, [Nq+Nkv:] -> v-side
    # cols [0:D]  -> wq,     [D:2D]      -> wk,     [2D:3D]    -> wv
    X = jnp.concatenate([qn, kn, vn], axis=0)              # [Nq+2*Nkv, D] (sublane concat)
    QKV = _mm(X, wqkv_ref[...]) + bqkv_ref[...]            # [Nq+2*Nkv, 3D] f32

    # ---- head split: (h, b)-major leading batch axis of size G = H*B -------
    def split_heads(row0, rows, col0, S):
        per_h = [QKV[row0:row0 + rows, col0 + h * hd:col0 + (h + 1) * hd]
                 for h in range(H)]                        # H x [rows, hd] static lane slices
        return jnp.stack(per_h, axis=0).reshape(H * B, S, hd)  # leading stack + aligned reshape

    Qh = split_heads(0, Nq, 0, Sq)                         # [G, Sq,  hd]
    Kh = split_heads(Nq, Nkv, D, Skv)                      # [G, Skv, hd]
    Vh = split_heads(Nq + Nkv, Nkv, 2 * D, Skv)            # [G, Skv, hd]

    # ---- attention, batched over G = B*H (two MXU einsums total) -----------
    scale = 1.0 / math.sqrt(hd)
    att = jnp.einsum('gqd,gkd->gqk',
                     Qh.astype(jnp.bfloat16), Kh.astype(jnp.bfloat16),
                     preferred_element_type=jnp.float32) * scale        # [G, Sq, Skv]
    att = att - jnp.max(att, axis=-1, keepdims=True)
    p = jnp.exp(att)
    # approx reciprocal runs on the EUP (free slot); not bit-exact softmax.
    p = p * pl.reciprocal(jnp.sum(p, axis=-1, keepdims=True), approx=True)
    Yh = jnp.einsum('gqk,gkd->gqd',
                    p.astype(jnp.bfloat16), Vh.astype(jnp.bfloat16),
                    preferred_element_type=jnp.float32)                 # [G, Sq, hd]

    # ---- merge heads back to [B*Sq, D] --------------------------------------
    Yh4 = Yh.reshape(H, B, Sq, hd)
    Y = jnp.concatenate([Yh4[h] for h in range(H)], axis=-1)            # [B, Sq, D]
    Y = Y.reshape(Nq, D)

    # output projection + residual on the LN'd q (per CABlock.forward)
    x1 = qn + _mm(Y, wo_ref[...]) + bo_ref[...]

    # MLP branch + residual
    h2 = _layernorm(x1, ln2w_ref[...], ln2b_ref[...])
    f = _gelu_tanh(_mm(h2, wfc_ref[...]) + bfc_ref[...])
    y = x1 + _mm(f, wpr_ref[...]) + bpr_ref[...]

    # single whole-array store (masked 32-of-128-lane vst at D=32; noise here)
    o_ref[...] = y.reshape(B, Sq, D).astype(o_ref.dtype)


# --------------------------------- wrapper ------------------------------------
def cablock_forward(q, k, v, params, *, nhead):
    B, Sq, D = q.shape

    f32 = lambda a: a.astype(jnp.float32)
    bf16 = lambda a: a.astype(jnp.bfloat16)

    # Pre-concatenate + pre-cast the matmul weights (host/XLA side, free):
    # bf16 weights halve HBM->VMEM bytes; LN params / biases stay f32.
    wqkv = bf16(jnp.concatenate([params["wq"], params["wk"], params["wv"]], axis=1))  # [D, 3D]
    bqkv = f32(jnp.concatenate([params["bq"], params["bk"], params["bv"]], axis=1))   # [1, 3D]

    weights = [
        f32(params["ln1w"]), f32(params["ln1b"]),
        wqkv, bqkv,
        bf16(params["wo"]), f32(params["bo"]),
        f32(params["ln2w"]), f32(params["ln2b"]),
        bf16(params["wfc"]), f32(params["bfc"]),
        bf16(params["wpr"]), f32(params["bpr"]),
    ]

    # Grid-less call: whole arrays live in VMEM (~50 KB total), one invocation.
    return pl.pallas_call(
        functools.partial(cablock_kernel, nhead=nhead),
        out_shape=jax.ShapeDtypeStruct((B, Sq, D), jnp.float32),
    )(q, k, v, *weights)


# ---------------------------- pure-JAX reference -------------------------------
# Mirrors the PyTorch CABlock math; matmul operands are cast to bf16 (f32
# accumulate) to match the kernel's MXU precision so the check stays tight.
def _ref_ln(x, w, b):
    mu = jnp.mean(x, axis=-1, keepdims=True)
    var = jnp.mean((x - mu) ** 2, axis=-1, keepdims=True)
    return (x - mu) / jnp.sqrt(var + EPS) * w + b


def ref_cablock(q, k, v, p, *, nhead):
    B, Sq, D = q.shape
    Skv = k.shape[1]
    hd = D // nhead

    def mm(a, b):
        return jnp.einsum('...ij,jk->...ik',
                          a.astype(jnp.bfloat16), b.astype(jnp.bfloat16),
                          preferred_element_type=jnp.float32)

    qn = _ref_ln(q, p["ln1w"], p["ln1b"])
    kn = _ref_ln(k, p["ln1w"], p["ln1b"])
    vn = _ref_ln(v, p["ln1w"], p["ln1b"])

    Q = mm(qn, p["wq"]) + p["bq"]
    K = mm(kn, p["wk"]) + p["bk"]
    V = mm(vn, p["wv"]) + p["bv"]

    Qh = Q.reshape(B, Sq, nhead, hd).transpose(0, 2, 1, 3)
    Kh = K.reshape(B, Skv, nhead, hd).transpose(0, 2, 1, 3)
    Vh = V.reshape(B, Skv, nhead, hd).transpose(0, 2, 1, 3)

    att = jnp.einsum('bhqd,bhkd->bhqk',
                     Qh.astype(jnp.bfloat16), Kh.astype(jnp.bfloat16),
                     preferred_element_type=jnp.float32) / math.sqrt(hd)
    att = jax.nn.softmax(att, axis=-1)
    Y = jnp.einsum('bhqk,bhkd->bhqd',
                   att.astype(jnp.bfloat16), Vh.astype(jnp.bfloat16),
                   preferred_element_type=jnp.float32)
    Y = Y.transpose(0, 2, 1, 3).reshape(B, Sq, D)

    x1 = qn + mm(Y, p["wo"]) + p["bo"]
    h2 = _ref_ln(x1, p["ln2w"], p["ln2b"])
    f = _gelu_tanh(mm(h2, p["wfc"]) + p["bfc"])
    return x1 + mm(f, p["wpr"]) + p["bpr"]


# ------------------------------ parameter init ---------------------------------
def init_params(seed, D):
    key = jax.random.PRNGKey(seed)

    def nxt():
        nonlocal key
        key, sub = jax.random.split(key)
        return sub

    std = 0.2
    return {
        "ln1w": 1.0 + 0.1 * jax.random.normal(nxt(), (1, D), jnp.float32),
        "ln1b": 0.1 * jax.random.normal(nxt(), (1, D), jnp.float32),
        "wq": std * jax.random.normal(nxt(), (D, D), jnp.float32),
        "bq": std * jax.random.normal(nxt(), (1, D), jnp.float32),
        "wk": std * jax.random.normal(nxt(), (D, D), jnp.float32),
        "bk": std * jax.random.normal(nxt(), (1, D), jnp.float32),
        "wv": std * jax.random.normal(nxt(), (D, D), jnp.float32),
        "bv": std * jax.random.normal(nxt(), (1, D), jnp.float32),
        "wo": std * jax.random.normal(nxt(), (D, D), jnp.float32),
        "bo": std * jax.random.normal(nxt(), (1, D), jnp.float32),
        "ln2w": 1.0 + 0.1 * jax.random.normal(nxt(), (1, D), jnp.float32),
        "ln2b": 0.1 * jax.random.normal(nxt(), (1, D), jnp.float32),
        "wfc": std * jax.random.normal(nxt(), (D, 2 * D), jnp.float32),
        "bfc": std * jax.random.normal(nxt(), (1, 2 * D), jnp.float32),
        "wpr": std * jax.random.normal(nxt(), (2 * D, D), jnp.float32),
        "bpr": std * jax.random.normal(nxt(), (1, D), jnp.float32),
    }


# ------------------------------------ main --------------------------------------
if __name__ == "__main__":
    B, SQ, SKV = 2, 8, 16       # batch, query length, key/value length
    D, NHEAD = 32, 4            # embed_dim, attention heads

    params = init_params(1, D)
    kq, kk, kv = jax.random.split(jax.random.PRNGKey(0), 3)
    q = jax.random.normal(kq, (B, SQ, D), jnp.float32)
    k = jax.random.normal(kk, (B, SKV, D), jnp.float32)
    v = jax.random.normal(kv, (B, SKV, D), jnp.float32)

    fwd = jax.jit(functools.partial(cablock_forward, nhead=NHEAD))
    out = jax.block_until_ready(fwd(q, k, v, params))
    ref = jax.block_until_ready(ref_cablock(q, k, v, params, nhead=NHEAD))

    assert out.shape == (B, SQ, D)
    max_err = float(jnp.max(jnp.abs(out - ref)))
    assert jnp.allclose(out, ref, rtol=1e-2, atol=1e-2), max_err
    print("KERNEL_OK")
</pallas_src>

<mosaic_0001>
module attributes {stable_mosaic.version = 11 : i64} {
  func.func @cablock_kernel(%arg0: memref<2x8x32xf32, #tpu.memory_space<vmem>>, %arg1: memref<2x16x32xf32, #tpu.memory_space<vmem>>, %arg2: memref<2x16x32xf32, #tpu.memory_space<vmem>>, %arg3: memref<1x32xf32, #tpu.memory_space<vmem>>, %arg4: memref<1x32xf32, #tpu.memory_space<vmem>>, %arg5: memref<32x96xbf16, #tpu.memory_space<vmem>>, %arg6: memref<1x96xf32, #tpu.memory_space<vmem>>, %arg7: memref<32x32xbf16, #tpu.memory_space<vmem>>, %arg8: memref<1x32xf32, #tpu.memory_space<vmem>>, %arg9: memref<1x32xf32, #tpu.memory_space<vmem>>, %arg10: memref<1x32xf32, #tpu.memory_space<vmem>>, %arg11: memref<32x64xbf16, #tpu.memory_space<vmem>>, %arg12: memref<1x64xf32, #tpu.memory_space<vmem>>, %arg13: memref<64x32xbf16, #tpu.memory_space<vmem>>, %arg14: memref<1x32xf32, #tpu.memory_space<vmem>>, %arg15: memref<2x8x32xf32, #tpu.memory_space<vmem>>) attributes {dimension_semantics = [], scalar_prefetch = 0 : i64, scratch_operands = 0 : i64, tpu.core_type = #tpu.core_type<tc>} {
    %c0 = arith.constant 0 : index
    %c0_0 = arith.constant 0 : index
    %c0_1 = arith.constant 0 : index
    %0 = vector.load %arg0[%c0, %c0_0, %c0_1] : memref<2x8x32xf32, #tpu.memory_space<vmem>>, vector<2x8x32xf32>
    %1 = vector.shape_cast %0 : vector<2x8x32xf32> to vector<16x32xf32>
    %c0_2 = arith.constant 0 : index
    %c0_3 = arith.constant 0 : index
    %c0_4 = arith.constant 0 : index
    %2 = vector.load %arg1[%c0_2, %c0_3, %c0_4] : memref<2x16x32xf32, #tpu.memory_space<vmem>>, vector<2x16x32xf32>
    %3 = vector.shape_cast %2 : vector<2x16x32xf32> to vector<32x32xf32>
    %c0_5 = arith.constant 0 : index
    %c0_6 = arith.constant 0 : index
    %c0_7 = arith.constant 0 : index
    %4 = vector.load %arg2[%c0_5, %c0_6, %c0_7] : memref<2x16x32xf32, #tpu.memory_space<vmem>>, vector<2x16x32xf32>
    %5 = vector.shape_cast %4 : vector<2x16x32xf32> to vector<32x32xf32>
    %c0_8 = arith.constant 0 : index
    %c0_9 = arith.constant 0 : index
    %6 = vector.load %arg3[%c0_8, %c0_9] : memref<1x32xf32, #tpu.memory_space<vmem>>, vector<1x32xf32>
    %c0_10 = arith.constant 0 : index
    %c0_11 = arith.constant 0 : index
    %7 = vector.load %arg4[%c0_10, %c0_11] : memref<1x32xf32, #tpu.memory_space<vmem>>, vector<1x32xf32>
    %cst = arith.constant dense<0.000000e+00> : vector<16xf32>
    %8 = vector.multi_reduction <add>, %1, %cst [1] : vector<16x32xf32> to vector<16xf32>
    %9 = vector.shape_cast %8 : vector<16xf32> to vector<16x1xf32>
    %cst_12 = arith.constant 3.200000e+01 : f32
    %10 = vector.broadcast %cst_12 : f32 to vector<16x1xf32>
    %11 = arith.divf %9, %10 : vector<16x1xf32>
    %12 = vector.broadcast %11 : vector<16x1xf32> to vector<16x32xf32>
    %13 = arith.subf %1, %12 : vector<16x32xf32>
    %14 = arith.mulf %13, %13 : vector<16x32xf32>
    %cst_13 = arith.constant dense<0.000000e+00> : vector<16xf32>
    %15 = vector.multi_reduction <add>, %14, %cst_13 [1] : vector<16x32xf32> to vector<16xf32>
    %16 = vector.shape_cast %15 : vector<16xf32> to vector<16x1xf32>
    %cst_14 = arith.constant 3.200000e+01 : f32
    %17 = vector.broadcast %cst_14 : f32 to vector<16x1xf32>
    %18 = arith.divf %16, %17 : vector<16x1xf32>
    %19 = vector.broadcast %11 : vector<16x1xf32> to vector<16x32xf32>
    %20 = arith.subf %1, %19 : vector<16x32xf32>
    %cst_15 = arith.constant 9.99999974E-6 : f32
    %21 = vector.broadcast %cst_15 : f32 to vector<16x1xf32>
    %22 = arith.addf %18, %21 : vector<16x1xf32>
    %23 = math.rsqrt %22 : vector<16x1xf32>
    %24 = vector.broadcast %23 : vector<16x1xf32> to vector<16x32xf32>
    %25 = arith.mulf %20, %24 : vector<16x32xf32>
    %26 = vector.broadcast %6 : vector<1x32xf32> to vector<16x32xf32>
    %27 = arith.mulf %25, %26 : vector<16x32xf32>
    %28 = vector.broadcast %7 : vector<1x32xf32> to vector<16x32xf32>
    %29 = arith.addf %27, %28 : vector<16x32xf32>
    %cst_16 = arith.constant dense<0.000000e+00> : vector<32xf32>
    %30 = vector.multi_reduction <add>, %3, %cst_16 [1] : vector<32x32xf32> to vector<32xf32>
    %31 = vector.shape_cast %30 : vector<32xf32> to vector<32x1xf32>
    %cst_17 = arith.constant 3.200000e+01 : f32
    %32 = vector.broadcast %cst_17 : f32 to vector<32x1xf32>
    %33 = arith.divf %31, %32 : vector<32x1xf32>
    %34 = vector.broadcast %33 : vector<32x1xf32> to vector<32x32xf32>
    %35 = arith.subf %3, %34 : vector<32x32xf32>
    %36 = arith.mulf %35, %35 : vector<32x32xf32>
    %cst_18 = arith.constant dense<0.000000e+00> : vector<32xf32>
    %37 = vector.multi_reduction <add>, %36, %cst_18 [1] : vector<32x32xf32> to vector<32xf32>
    %38 = vector.shape_cast %37 : vector<32xf32> to vector<32x1xf32>
    %cst_19 = arith.constant 3.200000e+01 : f32
    %39 = vector.broadcast %cst_19 : f32 to vector<32x1xf32>
    %40 = arith.divf %38, %39 : vector<32x1xf32>
    %41 = vector.broadcast %33 : vector<32x1xf32> to vector<32x32xf32>
    %42 = arith.subf %3, %41 : vector<32x32xf32>
    %cst_20 = arith.constant 9.99999974E-6 : f32
    %43 = vector.broadcast %cst_20 : f32 to vector<32x1xf32>
    %44 = arith.addf %40, %43 : vector<32x1xf32>
    %45 = math.rsqrt %44 : vector<32x1xf32>
    %46 = vector.broadcast %45 : vector<32x1xf32> to vector<32x32xf32>
    %47 = arith.mulf %42, %46 : vector<32x32xf32>
    %48 = vector.broadcast %6 : vector<1x32xf32> to vector<32x32xf32>
    %49 = arith.mulf %47, %48 : vector<32x32xf32>
    %50 = vector.broadcast %7 : vector<1x32xf32> to vector<32x32xf32>
    %51 = arith.addf %49, %50 : vector<32x32xf32>
    %cst_21 = arith.constant dense<0.000000e+00> : vector<32xf32>
    %52 = vector.multi_reduction <add>, %5, %cst_21 [1] : vector<32x32xf32> to vector<32xf32>
    %53 = vector.shape_cast %52 : vector<32xf32> to vector<32x1xf32>
    %cst_22 = arith.constant 3.200000e+01 : f32
    %54 = vector.broadcast %cst_22 : f32 to vector<32x1xf32>
    %55 = arith.divf %53, %54 : vector<32x1xf32>
    %56 = vector.broadcast %55 : vector<32x1xf32> to vector<32x32xf32>
    %57 = arith.subf %5, %56 : vector<32x32xf32>
    %58 = arith.mulf %57, %57 : vector<32x32xf32>
    %cst_23 = arith.constant dense<0.000000e+00> : vector<32xf32>
    %59 = vector.multi_reduction <add>, %58, %cst_23 [1] : vector<32x32xf32> to vector<32xf32>
    %60 = vector.shape_cast %59 : vector<32xf32> to vector<32x1xf32>
    %cst_24 = arith.constant 3.200000e+01 : f32
    %61 = vector.broadcast %cst_24 : f32 to vector<32x1xf32>
    %62 = arith.divf %60, %61 : vector<32x1xf32>
    %63 = vector.broadcast %55 : vector<32x1xf32> to vector<32x32xf32>
    %64 = arith.subf %5, %63 : vector<32x32xf32>
    %cst_25 = arith.constant 9.99999974E-6 : f32
    %65 = vector.broadcast %cst_25 : f32 to vector<32x1xf32>
    %66 = arith.addf %62, %65 : vector<32x1xf32>
    %67 = math.rsqrt %66 : vector<32x1xf32>
    %68 = vector.broadcast %67 : vector<32x1xf32> to vector<32x32xf32>
    %69 = arith.mulf %64, %68 : vector<32x32xf32>
    %70 = vector.broadcast %6 : vector<1x32xf32> to vector<32x32xf32>
    %71 = arith.mulf %69, %70 : vector<32x32xf32>
    %72 = vector.broadcast %7 : vector<1x32xf32> to vector<32x32xf32>
    %73 = arith.addf %71, %72 : vector<32x32xf32>
    %74 = tpu.concatenate %29, %51, %73 in 0 : vector<16x32xf32>, vector<32x32xf32>, vector<32x32xf32> -> vector<80x32xf32>
    %c0_26 = arith.constant 0 : index
    %c0_27 = arith.constant 0 : index
    %75 = vector.load %arg5[%c0_26, %c0_27] : memref<32x96xbf16, #tpu.memory_space<vmem>>, vector<32x96xbf16>
    %76 = arith.truncf %74 : vector<80x32xf32> to vector<80x32xbf16>
    %cst_28 = arith.constant dense<0.000000e+00> : vector<80x96xf32>
    %77 = tpu.matmul %76, %75, %cst_28 {dimension_numbers = #tpu.dot_dimension_numbers<[1], [0], [0], [1], [0, 0, 1, 1], [], []>} : vector<80x32xbf16>, vector<32x96xbf16>, vector<80x96xf32> -> vector<80x96xf32>
    %c0_29 = arith.constant 0 : index
    %c0_30 = arith.constant 0 : index
    %78 = vector.load %arg6[%c0_29, %c0_30] : memref<1x96xf32, #tpu.memory_space<vmem>>, vector<1x96xf32>
    %79 = vector.broadcast %78 : vector<1x96xf32> to vector<80x96xf32>
    %80 = arith.addf %77, %79 : vector<80x96xf32>
    %81 = vector.extract_strided_slice %80 {offsets = [0, 0], sizes = [16, 8], strides = [1, 1]} : vector<80x96xf32> to vector<16x8xf32>
    %82 = vector.extract_strided_slice %80 {offsets = [0, 8], sizes = [16, 8], strides = [1, 1]} : vector<80x96xf32> to vector<16x8xf32>
    %83 = vector.extract_strided_slice %80 {offsets = [0, 16], sizes = [16, 8], strides = [1, 1]} : vector<80x96xf32> to vector<16x8xf32>
    %84 = vector.extract_strided_slice %80 {offsets = [0, 24], sizes = [16, 8], strides = [1, 1]} : vector<80x96xf32> to vector<16x8xf32>
    %85 = vector.shape_cast %81 : vector<16x8xf32> to vector<1x16x8xf32>
    %86 = vector.shape_cast %82 : vector<16x8xf32> to vector<1x16x8xf32>
    %87 = vector.shape_cast %83 : vector<16x8xf32> to vector<1x16x8xf32>
    %88 = vector.shape_cast %84 : vector<16x8xf32> to vector<1x16x8xf32>
    %89 = tpu.concatenate %85, %86, %87, %88 in 0 : vector<1x16x8xf32>, vector<1x16x8xf32>, vector<1x16x8xf32>, vector<1x16x8xf32> -> vector<4x16x8xf32>
    %90 = vector.shape_cast %89 : vector<4x16x8xf32> to vector<8x8x8xf32>
    %91 = vector.extract_strided_slice %80 {offsets = [16, 32], sizes = [32, 8], strides = [1, 1]} : vector<80x96xf32> to vector<32x8xf32>
    %92 = vector.extract_strided_slice %80 {offsets = [16, 40], sizes = [32, 8], strides = [1, 1]} : vector<80x96xf32> to vector<32x8xf32>
    %93 = vector.extract_strided_slice %80 {offsets = [16, 48], sizes = [32, 8], strides = [1, 1]} : vector<80x96xf32> to vector<32x8xf32>
    %94 = vector.extract_strided_slice %80 {offsets = [16, 56], sizes = [32, 8], strides = [1, 1]} : vector<80x96xf32> to vector<32x8xf32>
    %95 = vector.shape_cast %91 : vector<32x8xf32> to vector<1x32x8xf32>
    %96 = vector.shape_cast %92 : vector<32x8xf32> to vector<1x32x8xf32>
    %97 = vector.shape_cast %93 : vector<32x8xf32> to vector<1x32x8xf32>
    %98 = vector.shape_cast %94 : vector<32x8xf32> to vector<1x32x8xf32>
    %99 = tpu.concatenate %95, %96, %97, %98 in 0 : vector<1x32x8xf32>, vector<1x32x8xf32>, vector<1x32x8xf32>, vector<1x32x8xf32> -> vector<4x32x8xf32>
    %100 = vector.shape_cast %99 : vector<4x32x8xf32> to vector<8x16x8xf32>
    %101 = vector.extract_strided_slice %80 {offsets = [48, 64], sizes = [32, 8], strides = [1, 1]} : vector<80x96xf32> to vector<32x8xf32>
    %102 = vector.extract_strided_slice %80 {offsets = [48, 72], sizes = [32, 8], strides = [1, 1]} : vector<80x96xf32> to vector<32x8xf32>
    %103 = vector.extract_strided_slice %80 {offsets = [48, 80], sizes = [32, 8], strides = [1, 1]} : vector<80x96xf32> to vector<32x8xf32>
    %104 = vector.extract_strided_slice %80 {offsets = [48, 88], sizes = [32, 8], strides = [1, 1]} : vector<80x96xf32> to vector<32x8xf32>
    %105 = vector.shape_cast %101 : vector<32x8xf32> to vector<1x32x8xf32>
    %106 = vector.shape_cast %102 : vector<32x8xf32> to vector<1x32x8xf32>
    %107 = vector.shape_cast %103 : vector<32x8xf32> to vector<1x32x8xf32>
    %108 = vector.shape_cast %104 : vector<32x8xf32> to vector<1x32x8xf32>
    %109 = tpu.concatenate %105, %106, %107, %108 in 0 : vector<1x32x8xf32>, vector<1x32x8xf32>, vector<1x32x8xf32>, vector<1x32x8xf32> -> vector<4x32x8xf32>
    %110 = vector.shape_cast %109 : vector<4x32x8xf32> to vector<8x16x8xf32>
    %111 = arith.truncf %90 : vector<8x8x8xf32> to vector<8x8x8xbf16>
    %112 = arith.truncf %100 : vector<8x16x8xf32> to vector<8x16x8xbf16>
    "tpu.trace_start"() <{level = 10 : i32, message = "gqd,gkd->gqk"}> : () -> ()
    %cst_31 = arith.constant dense<0.000000e+00> : vector<8x8x16xf32>
    %113 = tpu.matmul %111, %112, %cst_31 {dimension_numbers = #tpu.dot_dimension_numbers<[2], [2], [1], [1], [0, 0, 0, 1, 1, 1], [0], [0]>} : vector<8x8x8xbf16>, vector<8x16x8xbf16>, vector<8x8x16xf32> -> vector<8x8x16xf32>
    "tpu.trace_stop"() : () -> ()
    %cst_32 = arith.constant 0.353553385 : f32
    %114 = vector.broadcast %cst_32 : f32 to vector<8x8x16xf32>
    %115 = arith.mulf %113, %114 : vector<8x8x16xf32>
    %cst_33 = arith.constant dense<0xFF800000> : vector<8x8xf32>
    %116 = vector.multi_reduction <maximumf>, %115, %cst_33 [2] : vector<8x8x16xf32> to vector<8x8xf32>
    %117 = vector.shape_cast %116 : vector<8x8xf32> to vector<8x8x1xf32>
    %118 = vector.broadcast %117 : vector<8x8x1xf32> to vector<8x8x16xf32>
    %119 = arith.subf %115, %118 : vector<8x8x16xf32>
    %120 = math.exp %119 : vector<8x8x16xf32>
    %cst_34 = arith.constant dense<0.000000e+00> : vector<8x8xf32>
    %121 = vector.multi_reduction <add>, %120, %cst_34 [2] : vector<8x8x16xf32> to vector<8x8xf32>
    %122 = vector.shape_cast %121 : vector<8x8xf32> to vector<8x8x1xf32>
    %123 = tpu.reciprocal %122 {approx = true} : vector<8x8x1xf32> -> vector<8x8x1xf32>
    %124 = vector.broadcast %123 : vector<8x8x1xf32> to vector<8x8x16xf32>
    %125 = arith.mulf %120, %124 : vector<8x8x16xf32>
    %126 = arith.truncf %125 : vector<8x8x16xf32> to vector<8x8x16xbf16>
    %127 = arith.truncf %110 : vector<8x16x8xf32> to vector<8x16x8xbf16>
    "tpu.trace_start"() <{level = 10 : i32, message = "gqk,gkd->gqd"}> : () -> ()
    %cst_35 = arith.constant dense<0.000000e+00> : vector<8x8x8xf32>
    %128 = tpu.matmul %126, %127, %cst_35 {dimension_numbers = #tpu.dot_dimension_numbers<[2], [1], [1], [2], [0, 0, 0, 1, 1, 2], [0], [0]>} : vector<8x8x16xbf16>, vector<8x16x8xbf16>, vector<8x8x8xf32> -> vector<8x8x8xf32>
    "tpu.trace_stop"() : () -> ()
    %129 = vector.shape_cast %128 : vector<8x8x8xf32> to vector<4x2x8x8xf32>
    %130 = vector.extract_strided_slice %129 {offsets = [0, 0, 0, 0], sizes = [1, 2, 8, 8], strides = [1, 1, 1, 1]} : vector<4x2x8x8xf32> to vector<1x2x8x8xf32>
    %131 = vector.shape_cast %130 : vector<1x2x8x8xf32> to vector<2x8x8xf32>
    %132 = vector.extract_strided_slice %129 {offsets = [1, 0, 0, 0], sizes = [1, 2, 8, 8], strides = [1, 1, 1, 1]} : vector<4x2x8x8xf32> to vector<1x2x8x8xf32>
    %133 = vector.shape_cast %132 : vector<1x2x8x8xf32> to vector<2x8x8xf32>
    %134 = vector.extract_strided_slice %129 {offsets = [2, 0, 0, 0], sizes = [1, 2, 8, 8], strides = [1, 1, 1, 1]} : vector<4x2x8x8xf32> to vector<1x2x8x8xf32>
    %135 = vector.shape_cast %134 : vector<1x2x8x8xf32> to vector<2x8x8xf32>
    %136 = vector.extract_strided_slice %129 {offsets = [3, 0, 0, 0], sizes = [1, 2, 8, 8], strides = [1, 1, 1, 1]} : vector<4x2x8x8xf32> to vector<1x2x8x8xf32>
    %137 = vector.shape_cast %136 : vector<1x2x8x8xf32> to vector<2x8x8xf32>
    %138 = tpu.concatenate %131, %133, %135, %137 in 2 : vector<2x8x8xf32>, vector<2x8x8xf32>, vector<2x8x8xf32>, vector<2x8x8xf32> -> vector<2x8x32xf32>
    %139 = vector.shape_cast %138 : vector<2x8x32xf32> to vector<16x32xf32>
    %c0_36 = arith.constant 0 : index
    %c0_37 = arith.constant 0 : index
    %140 = vector.load %arg7[%c0_36, %c0_37] : memref<32x32xbf16, #tpu.memory_space<vmem>>, vector<32x32xbf16>
    %141 = arith.truncf %139 : vector<16x32xf32> to vector<16x32xbf16>
    %cst_38 = arith.constant dense<0.000000e+00> : vector<16x32xf32>
    %142 = tpu.matmul %141, %140, %cst_38 {dimension_numbers = #tpu.dot_dimension_numbers<[1], [0], [0], [1], [0, 0, 1, 1], [], []>} : vector<16x32xbf16>, vector<32x32xbf16>, vector<16x32xf32> -> vector<16x32xf32>
    %143 = arith.addf %29, %142 : vector<16x32xf32>
    %c0_39 = arith.constant 0 : index
    %c0_40 = arith.constant 0 : index
    %144 = vector.load %arg8[%c0_39, %c0_40] : memref<1x32xf32, #tpu.memory_space<vmem>>, vector<1x32xf32>
    %145 = vector.broadcast %144 : vector<1x32xf32> to vector<16x32xf32>
    %146 = arith.addf %143, %145 : vector<16x32xf32>
    %c0_41 = arith.constant 0 : index
    %c0_42 = arith.constant 0 : index
    %147 = vector.load %arg9[%c0_41, %c0_42] : memref<1x32xf32, #tpu.memory_space<vmem>>, vector<1x32xf32>
    %c0_43 = arith.constant 0 : index
    %c0_44 = arith.constant 0 : index
    %148 = vector.load %arg10[%c0_43, %c0_44] : memref<1x32xf32, #tpu.memory_space<vmem>>, vector<1x32xf32>
    %cst_45 = arith.constant dense<0.000000e+00> : vector<16xf32>
    %149 = vector.multi_reduction <add>, %146, %cst_45 [1] : vector<16x32xf32> to vector<16xf32>
    %150 = vector.shape_cast %149 : vector<16xf32> to vector<16x1xf32>
    %cst_46 = arith.constant 3.200000e+01 : f32
    %151 = vector.broadcast %cst_46 : f32 to vector<16x1xf32>
    %152 = arith.divf %150, %151 : vector<16x1xf32>
    %153 = vector.broadcast %152 : vector<16x1xf32> to vector<16x32xf32>
    %154 = arith.subf %146, %153 : vector<16x32xf32>
    %155 = arith.mulf %154, %154 : vector<16x32xf32>
    %cst_47 = arith.constant dense<0.000000e+00> : vector<16xf32>
    %156 = vector.multi_reduction <add>, %155, %cst_47 [1] : vector<16x32xf32> to vector<16xf32>
    %157 = vector.shape_cast %156 : vector<16xf32> to vector<16x1xf32>
    %cst_48 = arith.constant 3.200000e+01 : f32
    %158 = vector.broadcast %cst_48 : f32 to vector<16x1xf32>
    %159 = arith.divf %157, %158 : vector<16x1xf32>
    %160 = vector.broadcast %152 : vector<16x1xf32> to vector<16x32xf32>
    %161 = arith.subf %146, %160 : vector<16x32xf32>
    %cst_49 = arith.constant 9.99999974E-6 : f32
    %162 = vector.broadcast %cst_49 : f32 to vector<16x1xf32>
    %163 = arith.addf %159, %162 : vector<16x1xf32>
    %164 = math.rsqrt %163 : vector<16x1xf32>
    %165 = vector.broadcast %164 : vector<16x1xf32> to vector<16x32xf32>
    %166 = arith.mulf %161, %165 : vector<16x32xf32>
    %167 = vector.broadcast %147 : vector<1x32xf32> to vector<16x32xf32>
    %168 = arith.mulf %166, %167 : vector<16x32xf32>
    %169 = vector.broadcast %148 : vector<1x32xf32> to vector<16x32xf32>
    %170 = arith.addf %168, %169 : vector<16x32xf32>
    %c0_50 = arith.constant 0 : index
    %c0_51 = arith.constant 0 : index
    %171 = vector.load %arg11[%c0_50, %c0_51] : memref<32x64xbf16, #tpu.memory_space<vmem>>, vector<32x64xbf16>
    %172 = arith.truncf %170 : vector<16x32xf32> to vector<16x32xbf16>
    %cst_52 = arith.constant dense<0.000000e+00> : vector<16x64xf32>
    %173 = tpu.matmul %172, %171, %cst_52 {dimension_numbers = #tpu.dot_dimension_numbers<[1], [0], [0], [1], [0, 0, 1, 1], [], []>} : vector<16x32xbf16>, vector<32x64xbf16>, vector<16x64xf32> -> vector<16x64xf32>
    %c0_53 = arith.constant 0 : index
    %c0_54 = arith.constant 0 : index
    %174 = vector.load %arg12[%c0_53, %c0_54] : memref<1x64xf32, #tpu.memory_space<vmem>>, vector<1x64xf32>
    %175 = vector.broadcast %174 : vector<1x64xf32> to vector<16x64xf32>
    %176 = arith.addf %173, %175 : vector<16x64xf32>
    %cst_55 = arith.constant 5.000000e-01 : f32
    %177 = vector.broadcast %cst_55 : f32 to vector<16x64xf32>
    %178 = arith.mulf %177, %176 : vector<16x64xf32>
    %cst_56 = arith.constant 4.471500e-02 : f32
    %179 = vector.broadcast %cst_56 : f32 to vector<16x64xf32>
    %180 = arith.mulf %179, %176 : vector<16x64xf32>
    %181 = arith.mulf %180, %176 : vector<16x64xf32>
    %182 = arith.mulf %181, %176 : vector<16x64xf32>
    %183 = arith.addf %176, %182 : vector<16x64xf32>
    %cst_57 = arith.constant 0.797884583 : f32
    %184 = vector.broadcast %cst_57 : f32 to vector<16x64xf32>
    %185 = arith.mulf %184, %183 : vector<16x64xf32>
    %186 = math.tanh %185 : vector<16x64xf32>
    %cst_58 = arith.constant 1.000000e+00 : f32
    %187 = vector.broadcast %cst_58 : f32 to vector<16x64xf32>
    %188 = arith.addf %187, %186 : vector<16x64xf32>
    %189 = arith.mulf %178, %188 : vector<16x64xf32>
    %c0_59 = arith.constant 0 : index
    %c0_60 = arith.constant 0 : index
    %190 = vector.load %arg13[%c0_59, %c0_60] : memref<64x32xbf16, #tpu.memory_space<vmem>>, vector<64x32xbf16>
    %191 = arith.truncf %189 : vector<16x64xf32> to vector<16x64xbf16>
    %cst_61 = arith.constant dense<0.000000e+00> : vector<16x32xf32>
    %192 = tpu.matmul %191, %190, %cst_61 {dimension_numbers = #tpu.dot_dimension_numbers<[1], [0], [0], [1], [0, 0, 1, 1], [], []>} : vector<16x64xbf16>, vector<64x32xbf16>, vector<16x32xf32> -> vector<16x32xf32>
    %193 = arith.addf %146, %192 : vector<16x32xf32>
    %c0_62 = arith.constant 0 : index
    %c0_63 = arith.constant 0 : index
    %194 = vector.load %arg14[%c0_62, %c0_63] : memref<1x32xf32, #tpu.memory_space<vmem>>, vector<1x32xf32>
    %195 = vector.broadcast %194 : vector<1x32xf32> to vector<16x32xf32>
    %196 = arith.addf %193, %195 : vector<16x32xf32>
    %197 = vector.shape_cast %196 : vector<16x32xf32> to vector<2x8x32xf32>
    %c0_64 = arith.constant 0 : index
    %c0_65 = arith.constant 0 : index
    %c0_66 = arith.constant 0 : index
    %198 = vector.load %arg15[%c0_64, %c0_65, %c0_66] : memref<2x8x32xf32, #tpu.memory_space<vmem>>, vector<2x8x32xf32>
    tpu.vector_store %arg15[%c0_64, %c0_65, %c0_66], %197 {strides = array<i32>} : memref<2x8x32xf32, #tpu.memory_space<vmem>>, vector<2x8x32xf32>,
    return
  }
}

</mosaic_0001>

<llo_original>
// kernel: cablock_forward.1
$region0: #{cablock_forward.1}
  #allocation0 [shape = 'u32[]', space=smem, size = 0x4, offset = 0x4, fixed_abs, tag = 'smem constant byte address 0x4 - core index']
  #allocation1 [shape = 'u32[144,128]{1,0:T(1,128)}', space=vmem, size = 0x12000, scoped, tag = 'internal scratch']
  %s0 = inlined_call_operand.vmem [shape: f32[2,8,32], index: 0, kind: input, shape index: {}]
  %s1 = inlined_call_operand.vmem [shape: f32[2,16,32], index: 1, kind: input, shape index: {}]
  %s2 = inlined_call_operand.vmem [shape: f32[2,16,32], index: 2, kind: input, shape index: {}]
  %s3 = inlined_call_operand.vmem [shape: f32[1,32], index: 3, kind: input, shape index: {}]
  %s4 = inlined_call_operand.vmem [shape: f32[1,32], index: 4, kind: input, shape index: {}]
  %s5 = inlined_call_operand.vmem [shape: bf16[32,96], index: 5, kind: input, shape index: {}]
  %s6 = inlined_call_operand.vmem [shape: f32[1,96], index: 6, kind: input, shape index: {}]
  %s7 = inlined_call_operand.vmem [shape: bf16[32,32], index: 7, kind: input, shape index: {}]
  %s8 = inlined_call_operand.vmem [shape: f32[1,32], index: 8, kind: input, shape index: {}]
  %s9 = inlined_call_operand.vmem [shape: f32[1,32], index: 9, kind: input, shape index: {}]
  %s10 = inlined_call_operand.vmem [shape: f32[1,32], index: 10, kind: input, shape index: {}]
  %s11 = inlined_call_operand.vmem [shape: bf16[32,64], index: 11, kind: input, shape index: {}]
  %s12 = inlined_call_operand.vmem [shape: f32[1,64], index: 12, kind: input, shape index: {}]
  %s13 = inlined_call_operand.vmem [shape: bf16[64,32], index: 13, kind: input, shape index: {}]
  %s14 = inlined_call_operand.vmem [shape: f32[1,32], index: 14, kind: input, shape index: {}]
  %s15 = inlined_call_operand.hbm [shape: f32[2,8,32], index: 15, kind: output, shape index: {}]
  %s16 = sld [smem:[#allocation0]]
  $region70: #{cablock_forward.1} parent=0
    _
  %s18 = ssub.s32 1, %s16
  %s19 = scalar_select 0, %s18, %s16
  $region1: #{cablock_forward.1} parent=0
    #allocation2 [shape = 'u8[8192]{0}', space=vmem, size = 0x2000, scoped, tag = 'output window, operand 0, single buffered']
    #allocation3 [shape = 's32[1]{0}', space=sflag, size = 0x4, scoped, tag = 'scoped memory for cablock_forward.1']
    %20 = vsyncpa [#allocation3], 0
    // Predicated region
    $region2: #{cablock_forward.1} parent=1 // pred_check
      _
    $region3: #{cablock_forward.1} parent=1 // pred_check_branch
      %22 = sbr.rel (0) target = $region5
    $region4: #{cablock_forward.1} parent=1 // pred_region
      _
    $region5: #{cablock_forward.1} parent=1 // pred_fallthru
      _
    // Predicated region
    $region6: #{cablock_forward.1} parent=1 // pred_check
      _
    $region7: #{cablock_forward.1} parent=1 // pred_check_branch
      %24 = sbr.rel (0) target = $region9
    $region8: #{cablock_forward.1} parent=1 // pred_region
      _
    $region9: #{cablock_forward.1} parent=1 // pred_fallthru
      _
    // Predicated region
    $region10: #{cablock_forward.1} parent=1 // pred_check
      _
    $region11: #{cablock_forward.1} parent=1 // pred_check_branch
      %26 = sbr.rel (0) target = $region13
    $region12: #{cablock_forward.1} parent=1 // pred_region
      _
    $region13: #{cablock_forward.1} parent=1 // pred_fallthru
      _
    // Predicated region
    $region14: #{cablock_forward.1} parent=1 // pred_check
      _
    $region15: #{cablock_forward.1} parent=1 // pred_check_branch
      %28 = sbr.rel (0) target = $region17
    $region16: #{cablock_forward.1} parent=1 // pred_region
      _
    $region17: #{cablock_forward.1} parent=1 // pred_fallthru
      _
    // Predicated region
    $region18: #{cablock_forward.1} parent=1 // pred_check
      _
    $region19: #{cablock_forward.1} parent=1 // pred_check_branch
      %30 = sbr.rel (0) target = $region21
    $region20: #{cablock_forward.1} parent=1 // pred_region
      _
    $region21: #{cablock_forward.1} parent=1 // pred_fallthru
      _
    // Predicated region
    $region22: #{cablock_forward.1} parent=1 // pred_check
      _
    $region23: #{cablock_forward.1} parent=1 // pred_check_branch
      %32 = sbr.rel (0) target = $region25
    $region24: #{cablock_forward.1} parent=1 // pred_region
      _
    $region25: #{cablock_forward.1} parent=1 // pred_fallthru
      _
    // Predicated region
    $region26: #{cablock_forward.1} parent=1 // pred_check
      _
    $region27: #{cablock_forward.1} parent=1 // pred_check_branch
      %34 = sbr.rel (0) target = $region29
    $region28: #{cablock_forward.1} parent=1 // pred_region
      _
    $region29: #{cablock_forward.1} parent=1 // pred_fallthru
      _
    // Predicated region
    $region30: #{cablock_forward.1} parent=1 // pred_check
      _
    $region31: #{cablock_forward.1} parent=1 // pred_check_branch
      %36 = sbr.rel (0) target = $region33
    $region32: #{cablock_forward.1} parent=1 // pred_region
      _
    $region33: #{cablock_forward.1} parent=1 // pred_fallthru
      _
    // Predicated region
    $region34: #{cablock_forward.1} parent=1 // pred_check
      _
    $region35: #{cablock_forward.1} parent=1 // pred_check_branch
      %38 = sbr.rel (0) target = $region37
    $region36: #{cablock_forward.1} parent=1 // pred_region
      _
    $region37: #{cablock_forward.1} parent=1 // pred_fallthru
      _
    // Predicated region
    $region38: #{cablock_forward.1} parent=1 // pred_check
      _
    $region39: #{cablock_forward.1} parent=1 // pred_check_branch
      %40 = sbr.rel (0) target = $region41
    $region40: #{cablock_forward.1} parent=1 // pred_region
      _
    $region41: #{cablock_forward.1} parent=1 // pred_fallthru
      _
    // Predicated region
    $region42: #{cablock_forward.1} parent=1 // pred_check
      _
    $region43: #{cablock_forward.1} parent=1 // pred_check_branch
      %42 = sbr.rel (0) target = $region45
    $region44: #{cablock_forward.1} parent=1 // pred_region
      _
    $region45: #{cablock_forward.1} parent=1 // pred_fallthru
      _
    // Predicated region
    $region46: #{cablock_forward.1} parent=1 // pred_check
      _
    $region47: #{cablock_forward.1} parent=1 // pred_check_branch
      %44 = sbr.rel (0) target = $region49
    $region48: #{cablock_forward.1} parent=1 // pred_region
      _
    $region49: #{cablock_forward.1} parent=1 // pred_fallthru
      _
    // Predicated region
    $region50: #{cablock_forward.1} parent=1 // pred_check
      _
    $region51: #{cablock_forward.1} parent=1 // pred_check_branch
      %46 = sbr.rel (0) target = $region53
    $region52: #{cablock_forward.1} parent=1 // pred_region
      _
    $region53: #{cablock_forward.1} parent=1 // pred_fallthru
      _
    // Predicated region
    $region54: #{cablock_forward.1} parent=1 // pred_check
      _
    $region55: #{cablock_forward.1} parent=1 // pred_check_branch
      %48 = sbr.rel (0) target = $region57
    $region56: #{cablock_forward.1} parent=1 // pred_region
      _
    $region57: #{cablock_forward.1} parent=1 // pred_fallthru
      _
    // Predicated region
    $region58: #{cablock_forward.1} parent=1 // pred_check
      _
    $region59: #{cablock_forward.1} parent=1 // pred_check_branch
      %50 = sbr.rel (0) target = $region61
    $region60: #{cablock_forward.1} parent=1 // pred_region
      _
    $region61: #{cablock_forward.1} parent=1 // pred_fallthru
      _
    %v52 = vld [vmem:[%s0] sm:$0xff]
    %v53 = vld [vmem:[%s0 + $0x8] sm:$0xff]
    %v54 = vld [vmem:[%s1] sm:$0xff]
    %v55 = vld [vmem:[%s1 + $0x8] sm:$0xff]
    %v56 = vld [vmem:[%s1 + $0x10] sm:$0xff]
    %v57 = vld [vmem:[%s1 + $0x18] sm:$0xff]
    %v58 = vld [vmem:[%s2] sm:$0xff]
    %v59 = vld [vmem:[%s2 + $0x8] sm:$0xff]
    %v60 = vld [vmem:[%s2 + $0x10] sm:$0xff]
    %v61 = vld [vmem:[%s2 + $0x18] sm:$0xff]
    %v62 = vld [vmem:[%s3] sm:$0x1]
    %v63 = vld [vmem:[%s4] sm:$0x1]
    %vm64 = vcmask 261120
    %v65 = vsel %vm64, %v52, 0.0
    %66 = vadd.xlane.f32.xlu0 %v65
    %v67 = vpop.xlane.xlu0 %66
    %v68 = vsel %vm64, %v53, 0.0
    %69 = vadd.xlane.f32.xlu0 %v68
    %v70 = vpop.xlane.xlu0 %69
    %v71 = vrcp.pop 32.0
    %v72 = vmul.f32 %v67, %v71
    %v73 = vmul.f32 %v70, %v71
    %v74 = vsub.f32 %v52, %v72
    %v75 = vsub.f32 %v53, %v73
    %v76 = vmul.f32 %v74, %v74
    %v77 = vmul.f32 %v75, %v75
    %v78 = vsel %vm64, %v76, 0.0
    %79 = vadd.xlane.f32.xlu0 %v78
    %v80 = vpop.xlane.xlu0 %79
    %v81 = vsel %vm64, %v77, 0.0
    %82 = vadd.xlane.f32.xlu0 %v81
    %v83 = vpop.xlane.xlu0 %82
    %v84 = vmul.f32 %v80, %v71
    %v85 = vmul.f32 %v83, %v71
    %v86 = vadd.f32 %v84, 1e-05
    %v87 = vadd.f32 %v85, 1e-05
    %v88 = vrsqrt.pop %v86
    %v89 = vrsqrt.pop %v87
    %v90 = vmul.f32 %v74, %v88
    %v91 = vmul.f32 %v75, %v89
    %v93 = vlaneseq
    %v94 = vshrl.u32 %v93, 7
    %v95 = vsub.s32 0, %v94
    %v96 = vrot.slane %v62, %v95
    %v98 = vmul.f32 %v90, %v96
    %v99 = vmul.f32 %v91, %v96
    %v101 = vlaneseq
    %v102 = vshrl.u32 %v101, 7
    %v103 = vsub.s32 0, %v102
    %v104 = vrot.slane %v63, %v103
    %v106 = vadd.f32 %v98, %v104
    %v107 = vadd.f32 %v99, %v104
    %v108 = vsel %vm64, %v54, 0.0
    %109 = vadd.xlane.f32.xlu0 %v108
    %v110 = vpop.xlane.xlu0 %109
    %v111 = vsel %vm64, %v55, 0.0
    %112 = vadd.xlane.f32.xlu0 %v111
    %v113 = vpop.xlane.xlu0 %112
    %v114 = vsel %vm64, %v56, 0.0
    %115 = vadd.xlane.f32.xlu0 %v114
    %v116 = vpop.xlane.xlu0 %115
    %v117 = vsel %vm64, %v57, 0.0
    %118 = vadd.xlane.f32.xlu0 %v117
    %v119 = vpop.xlane.xlu0 %118
    %v120 = vmul.f32 %v110, %v71
    %v121 = vmul.f32 %v113, %v71
    %v122 = vmul.f32 %v116, %v71
    %v123 = vmul.f32 %v119, %v71
    %v124 = vsub.f32 %v54, %v120
    %v125 = vsub.f32 %v55, %v121
    %v126 = vsub.f32 %v56, %v122
    %v127 = vsub.f32 %v57, %v123
    %v128 = vmul.f32 %v124, %v124
    %v129 = vmul.f32 %v125, %v125
    %v130 = vmul.f32 %v126, %v126
    %v131 = vmul.f32 %v127, %v127
    %v132 = vsel %vm64, %v128, 0.0
    %133 = vadd.xlane.f32.xlu0 %v132
    %v134 = vpop.xlane.xlu0 %133
    %v135 = vsel %vm64, %v129, 0.0
    %136 = vadd.xlane.f32.xlu0 %v135
    %v137 = vpop.xlane.xlu0 %136
    %v138 = vsel %vm64, %v130, 0.0
    %139 = vadd.xlane.f32.xlu0 %v138
    %v140 = vpop.xlane.xlu0 %139
    %v141 = vsel %vm64, %v131, 0.0
    %142 = vadd.xlane.f32.xlu0 %v141
    %v143 = vpop.xlane.xlu0 %142
    %v144 = vmul.f32 %v134, %v71
    %v145 = vmul.f32 %v137, %v71
    %v146 = vmul.f32 %v140, %v71
    %v147 = vmul.f32 %v143, %v71
    %v148 = vadd.f32 %v144, 1e-05
    %v149 = vadd.f32 %v145, 1e-05
    %v150 = vadd.f32 %v146, 1e-05
    %v151 = vadd.f32 %v147, 1e-05
    %v152 = vrsqrt.pop %v148
    %v153 = vrsqrt.pop %v149
    %v154 = vrsqrt.pop %v150
    %v155 = vrsqrt.pop %v151
    %v156 = vmul.f32 %v124, %v152
    %v157 = vmul.f32 %v125, %v153
    %v158 = vmul.f32 %v126, %v154
    %v159 = vmul.f32 %v127, %v155
    %v160 = vmul.f32 %v156, %v96
    %v161 = vmul.f32 %v157, %v96
    %v162 = vmul.f32 %v158, %v96
    %v163 = vmul.f32 %v159, %v96
    %v164 = vadd.f32 %v160, %v104
    %v165 = vadd.f32 %v161, %v104
    %v166 = vadd.f32 %v162, %v104
    %v167 = vadd.f32 %v163, %v104
    %v168 = vsel %vm64, %v58, 0.0
    %169 = vadd.xlane.f32.xlu0 %v168
    %v170 = vpop.xlane.xlu0 %169
    %v171 = vsel %vm64, %v59, 0.0
    %172 = vadd.xlane.f32.xlu0 %v171
    %v173 = vpop.xlane.xlu0 %172
    %v174 = vsel %vm64, %v60, 0.0
    %175 = vadd.xlane.f32.xlu0 %v174
    %v176 = vpop.xlane.xlu0 %175
    %v177 = vsel %vm64, %v61, 0.0
    %178 = vadd.xlane.f32.xlu0 %v177
    %v179 = vpop.xlane.xlu0 %178
    %v180 = vmul.f32 %v170, %v71
    %v181 = vmul.f32 %v173, %v71
    %v182 = vmul.f32 %v176, %v71
    %v183 = vmul.f32 %v179, %v71
    %v184 = vsub.f32 %v58, %v180
    %v185 = vsub.f32 %v59, %v181
    %v186 = vsub.f32 %v60, %v182
    %v187 = vsub.f32 %v61, %v183
    %v188 = vmul.f32 %v184, %v184
    %v189 = vmul.f32 %v185, %v185
    %v190 = vmul.f32 %v186, %v186
    %v191 = vmul.f32 %v187, %v187
    %v192 = vsel %vm64, %v188, 0.0
    %193 = vadd.xlane.f32.xlu0 %v192
    %v194 = vpop.xlane.xlu0 %193
    %v195 = vsel %vm64, %v189, 0.0
    %196 = vadd.xlane.f32.xlu0 %v195
    %v197 = vpop.xlane.xlu0 %196
    %v198 = vsel %vm64, %v190, 0.0
    %199 = vadd.xlane.f32.xlu0 %v198
    %v200 = vpop.xlane.xlu0 %199
    %v201 = vsel %vm64, %v191, 0.0
    %202 = vadd.xlane.f32.xlu0 %v201
    %v203 = vpop.xlane.xlu0 %202
    %v204 = vmul.f32 %v194, %v71
    %v205 = vmul.f32 %v197, %v71
    %v206 = vmul.f32 %v200, %v71
    %v207 = vmul.f32 %v203, %v71
    %v208 = vadd.f32 %v204, 1e-05
    %v209 = vadd.f32 %v205, 1e-05
    %v210 = vadd.f32 %v206, 1e-05
    %v211 = vadd.f32 %v207, 1e-05
    %v212 = vrsqrt.pop %v208
    %v213 = vrsqrt.pop %v209
    %v214 = vrsqrt.pop %v210
    %v215 = vrsqrt.pop %v211
    %v216 = vmul.f32 %v184, %v212
    %v217 = vmul.f32 %v185, %v213
    %v218 = vmul.f32 %v186, %v214
    %v219 = vmul.f32 %v187, %v215
    %v220 = vmul.f32 %v216, %v96
    %v221 = vmul.f32 %v217, %v96
    %v222 = vmul.f32 %v218, %v96
    %v223 = vmul.f32 %v219, %v96
    %v224 = vadd.f32 %v220, %v104
    %v225 = vadd.f32 %v221, %v104
    %v226 = vadd.f32 %v222, %v104
    %v227 = vadd.f32 %v223, %v104
    %v228 = vld [vmem:[%s5] sm:$0xf]
    %v229 = vld [vmem:[%s5 + $0x4] sm:$0xf]
    %v230 = vld [vmem:[%s5 + $0x8] sm:$0xf]
    %v231 = vld [vmem:[%s5 + $0xc] sm:$0xf]
    %v232 = vpack.c.bf16 %v107, %v106
    %v233 = vpack.c.bf16 %v165, %v164
    %v234 = vpack.c.bf16 %v167, %v166
    %v235 = vpack.c.bf16 %v225, %v224
    %v236 = vpack.c.bf16 %v227, %v226
    %v237 = vld [vmem:[%s6] sm:$0x1]
    %v239 = vlaneseq
    %v240 = vshrl.u32 %v239, 7
    %v241 = vsub.s32 0, %v240
    %v242 = vrot.slane %v237, %v241
    %v248 = vunpack.c.l.b16 %v228
    %v249 = vunpack.c.l.b16 %v229
    %v250 = vunpack.c.l.b16 %v230
    %v251 = vunpack.c.l.b16 %v231
    %v252 = vpack.c.b16 %v249, %v248
    %v253 = vpack.c.b16 %v251, %v250
    %v257 = vsel %vm64, %v232, 0
    %v260 = vsel %vm64, %v233, 0
    %v263 = vsel %vm64, %v234, 0
    %v266 = vsel %vm64, %v235, 0
    %v269 = vsel %vm64, %v236, 0
    %271 = vmatprep.subr.bf16.mxu0 0
    %272 = vmatpush1.bf16.msra.mxu0 %v252
    %273 = vmatprep.subr.bf16.mxu0 0
    %274 = vmatpush1.bf16.msra.mxu0 %v253
    %275 = vmatprep.subr.bf16.mxu0 0
    %276 = vmatpush1.bf16.msra.mxu0 0
    %277 = vmatprep.subr.bf16.mxu0 0
    %278 = vmatpush1.bf16.msra.mxu0 0
    %279 = vmatprep.subr.bf16.mxu0 0
    %280 = vmatpush1.bf16.msra.mxu0 0
    %281 = vmatprep.subr.bf16.mxu0 0
    %282 = vmatpush1.bf16.msra.mxu0 0
    %283 = vmatprep.subr.bf16.mxu0 0
    %284 = vmatpush1.bf16.msra.mxu0 0
    %285 = vmatprep.subr.bf16.mxu0 0
    %286 = vmatpush1.bf16.msra.mxu0 0
    %287 = vmatprep.subr.bf16.mxu0 0
    %288 = vmatpush1.bf16.msra.mxu0 0
    %289 = vmatprep.subr.bf16.mxu0 0
    %290 = vmatpush1.bf16.msra.mxu0 0
    %291 = vmatprep.subr.bf16.mxu0 0
    %292 = vmatpush1.bf16.msra.mxu0 0
    %293 = vmatprep.subr.bf16.mxu0 0
    %294 = vmatpush1.bf16.msra.mxu0 0
    %295 = vmatprep.subr.bf16.mxu0 0
    %296 = vmatpush1.bf16.msra.mxu0 0
    %297 = vmatprep.subr.bf16.mxu0 0
    %298 = vmatpush1.bf16.msra.mxu0 0
    %299 = vmatprep.subr.bf16.mxu0 0
    %300 = vmatpush1.bf16.msra.mxu0 0
    %301 = vmatprep.subr.bf16.mxu0 0
    %302 = vmatpush1.bf16.msra.mxu0 0
    %303 = vmatprep.mubr.bf16.mxu0 0
    %304 = vmatmul.mubr.bf16.gmra.mrb[0].mxu0 %v257
    %v305 = vpop.f32.mrb[0].mxu0
    %v306 = vadd.f32 %v242, %v305
    %v307 = vpop.f32.mrb[0].mxu0
    %v308 = vpop.f32.mrb[0].mxu0
    %v309 = vadd.f32 %v242, %v308
    %v310 = vpop.f32.mrb[0].mxu0
    %311 = vmatprep.mubr.bf16.mxu0 0
    %312 = vmatmul.mubr.bf16.gmra.mrb[0].mxu0 %v260
    %v313 = vpop.f32.mrb[0].mxu0
    %v314 = vadd.f32 %v242, %v313
    %v315 = vpop.f32.mrb[0].mxu0
    %v316 = vpop.f32.mrb[0].mxu0
    %v317 = vadd.f32 %v242, %v316
    %v318 = vpop.f32.mrb[0].mxu0
    %319 = vmatprep.mubr.bf16.mxu0 0
    %320 = vmatmul.mubr.bf16.gmra.mrb[0].mxu0 %v263
    %v321 = vpop.f32.mrb[0].mxu0
    %v322 = vadd.f32 %v242, %v321
    %v323 = vpop.f32.mrb[0].mxu0
    %v324 = vpop.f32.mrb[0].mxu0
    %v325 = vadd.f32 %v242, %v324
    %v326 = vpop.f32.mrb[0].mxu0
    %327 = vmatprep.mubr.bf16.mxu0 0
    %328 = vmatmul.mubr.bf16.gmra.mrb[0].mxu0 %v266
    %v329 = vpop.f32.mrb[0].mxu0
    %v330 = vadd.f32 %v242, %v329
    %v331 = vpop.f32.mrb[0].mxu0
    %v332 = vpop.f32.mrb[0].mxu0
    %v333 = vadd.f32 %v242, %v332
    %v334 = vpop.f32.mrb[0].mxu0
    %335 = vmatprep.mubr.bf16.mxu0 0
    %336 = vmatmul.mubr.bf16.gmra.mrb[0].mxu0 %v269
    %v337 = vpop.f32.mrb[0].mxu0
    %v338 = vadd.f32 %v242, %v337
    %v339 = vpop.f32.mrb[0].mxu0
    %v340 = vpop.f32.mrb[0].mxu0
    %v341 = vadd.f32 %v242, %v340
    %v342 = vpop.f32.mrb[0].mxu0
    %343 = vdwg.mxu0
    %346 = vrot.lane.b32.xlu0 %v306, 120
    %v347 = vpop.permute.xlu0 %346
    %348 = vrot.lane.b32.xlu0 %v309, 120
    %v349 = vpop.permute.xlu0 %348
    %352 = vrot.lane.b32.xlu0 %v306, 112
    %v353 = vpop.permute.xlu0 %352
    %354 = vrot.lane.b32.xlu0 %v309, 112
    %v355 = vpop.permute.xlu0 %354
    %358 = vrot.lane.b32.xlu0 %v306, 104
    %v359 = vpop.permute.xlu0 %358
    %360 = vrot.lane.b32.xlu0 %v309, 104
    %v361 = vpop.permute.xlu0 %360
    %368 = vrot.lane.b32.xlu0 %v314, 120
    %v369 = vpop.permute.xlu0 %368
    %370 = vrot.lane.b32.xlu0 %v317, 120
    %v371 = vpop.permute.xlu0 %370
    %372 = vrot.lane.b32.xlu0 %v322, 120
    %v373 = vpop.permute.xlu0 %372
    %374 = vrot.lane.b32.xlu0 %v325, 120
    %v375 = vpop.permute.xlu0 %374
    %380 = vrot.lane.b32.xlu0 %v314, 112
    %v381 = vpop.permute.xlu0 %380
    %382 = vrot.lane.b32.xlu0 %v317, 112
    %v383 = vpop.permute.xlu0 %382
    %384 = vrot.lane.b32.xlu0 %v322, 112
    %v385 = vpop.permute.xlu0 %384
    %386 = vrot.lane.b32.xlu0 %v325, 112
    %v387 = vpop.permute.xlu0 %386
    %392 = vrot.lane.b32.xlu0 %v314, 104
    %v393 = vpop.permute.xlu0 %392
    %394 = vrot.lane.b32.xlu0 %v317, 104
    %v395 = vpop.permute.xlu0 %394
    %396 = vrot.lane.b32.xlu0 %v322, 104
    %v397 = vpop.permute.xlu0 %396
    %398 = vrot.lane.b32.xlu0 %v325, 104
    %v399 = vpop.permute.xlu0 %398
    %408 = vrot.lane.b32.xlu0 %v330, 120
    %v409 = vpop.permute.xlu0 %408
    %410 = vrot.lane.b32.xlu0 %v333, 120
    %v411 = vpop.permute.xlu0 %410
    %412 = vrot.lane.b32.xlu0 %v338, 120
    %v413 = vpop.permute.xlu0 %412
    %414 = vrot.lane.b32.xlu0 %v341, 120
    %v415 = vpop.permute.xlu0 %414
    %420 = vrot.lane.b32.xlu0 %v330, 112
    %v421 = vpop.permute.xlu0 %420
    %422 = vrot.lane.b32.xlu0 %v333, 112
    %v423 = vpop.permute.xlu0 %422
    %424 = vrot.lane.b32.xlu0 %v338, 112
    %v425 = vpop.permute.xlu0 %424
    %426 = vrot.lane.b32.xlu0 %v341, 112
    %v427 = vpop.permute.xlu0 %426
    %432 = vrot.lane.b32.xlu0 %v330, 104
    %v433 = vpop.permute.xlu0 %432
    %434 = vrot.lane.b32.xlu0 %v333, 104
    %v435 = vpop.permute.xlu0 %434
    %436 = vrot.lane.b32.xlu0 %v338, 104
    %v437 = vpop.permute.xlu0 %436
    %438 = vrot.lane.b32.xlu0 %v341, 104
    %v439 = vpop.permute.xlu0 %438
    %v444 = vpack.c.bf16 %v306, %v306
    %v445 = vpack.c.bf16 %v309, %v309
    %v446 = vpack.c.bf16 %v347, %v347
    %v447 = vpack.c.bf16 %v349, %v349
    %v448 = vpack.c.bf16 %v353, %v353
    %v449 = vpack.c.bf16 %v355, %v355
    %v450 = vpack.c.bf16 %v359, %v359
    %v451 = vpack.c.bf16 %v361, %v361
    %v452 = vpack.c.bf16 %v317, %v314
    %v453 = vpack.c.bf16 %v325, %v322
    %v454 = vpack.c.bf16 %v371, %v369
    %v455 = vpack.c.bf16 %v375, %v373
    %v456 = vpack.c.bf16 %v383, %v381
    %v457 = vpack.c.bf16 %v387, %v385
    %v458 = vpack.c.bf16 %v395, %v393
    %v459 = vpack.c.bf16 %v399, %v397
    %461 = vrot.lane.b32.xlu0 %v452, 96
    %v462 = vpop.permute.xlu0 %461
    %vm463 = vcmask 64512
    %v465 = vsel %vm463, %v444, 0
    %v468 = vsel %vm463, %v462, 0
    %470 = vmatprep.subr.bf16.mxu0 0
    %471 = vmatpush1.bf16.xpose.msra.mxu0 %v468
    %472 = vmatprep.subr.bf16.mxu0 0
    %473 = vmatpush1.bf16.xpose.msra.mxu0 0
    %474 = vmatprep.subr.bf16.mxu0 0
    %475 = vmatpush1.bf16.xpose.msra.mxu0 0
    %476 = vmatprep.subr.bf16.mxu0 0
    %477 = vmatpush1.bf16.xpose.msra.mxu0 0
    %478 = vmatprep.subr.bf16.mxu0 0
    %479 = vmatpush1.bf16.xpose.msra.mxu0 0
    %480 = vmatprep.subr.bf16.mxu0 0
    %481 = vmatpush1.bf16.xpose.msra.mxu0 0
    %482 = vmatprep.subr.bf16.mxu0 0
    %483 = vmatpush1.bf16.xpose.msra.mxu0 0
    %484 = vmatprep.subr.bf16.mxu0 0
    %485 = vmatpush1.bf16.xpose.msra.mxu0 0
    %486 = vmatprep.subr.bf16.mxu0 0
    %487 = vmatpush1.bf16.xpose.msra.mxu0 0
    %488 = vmatprep.subr.bf16.mxu0 0
    %489 = vmatpush1.bf16.xpose.msra.mxu0 0
    %490 = vmatprep.subr.bf16.mxu0 0
    %491 = vmatpush1.bf16.xpose.msra.mxu0 0
    %492 = vmatprep.subr.bf16.mxu0 0
    %493 = vmatpush1.bf16.xpose.msra.mxu0 0
    %494 = vmatprep.subr.bf16.mxu0 0
    %495 = vmatpush1.bf16.xpose.msra.mxu0 0
    %496 = vmatprep.subr.bf16.mxu0 0
    %497 = vmatpush1.bf16.xpose.msra.mxu0 0
    %498 = vmatprep.subr.bf16.mxu0 0
    %499 = vmatpush1.bf16.xpose.msra.mxu0 0
    %500 = vmatprep.subr.bf16.mxu0 0
    %501 = vmatpush1.bf16.xpose.msra.mxu0 0
    %502 = vmatprep.mubr.bf16.mxu0 0
    %503 = vmatmul.mubr.bf16.gmra.mrb[0].mxu0 %v465
    %v504 = vpop.f32.mrb[0].mxu0
    %v505 = vadd.f32 0.0, %v504
    %v506 = vpop.f32.mrb[0].mxu0
    %v507 = vpop.f32.mrb[0].mxu0
    %v508 = vpop.f32.mrb[0].mxu0
    %509 = vdwg.mxu0
    %511 = vrot.lane.b32.xlu0 %v453, 96
    %v512 = vpop.permute.xlu0 %511
    %v514 = vsel %vm463, %v445, 0
    %v517 = vsel %vm463, %v512, 0
    %519 = vmatprep.subr.bf16.mxu0 0
    %520 = vmatpush1.bf16.xpose.msra.mxu0 %v517
    %521 = vmatprep.subr.bf16.mxu0 0
    %522 = vmatpush1.bf16.xpose.msra.mxu0 0
    %523 = vmatprep.subr.bf16.mxu0 0
    %524 = vmatpush1.bf16.xpose.msra.mxu0 0
    %525 = vmatprep.subr.bf16.mxu0 0
    %526 = vmatpush1.bf16.xpose.msra.mxu0 0
    %527 = vmatprep.subr.bf16.mxu0 0
    %528 = vmatpush1.bf16.xpose.msra.mxu0 0
    %529 = vmatprep.subr.bf16.mxu0 0
    %530 = vmatpush1.bf16.xpose.msra.mxu0 0
    %531 = vmatprep.subr.bf16.mxu0 0
    %532 = vmatpush1.bf16.xpose.msra.mxu0 0
    %533 = vmatprep.subr.bf16.mxu0 0
    %534 = vmatpush1.bf16.xpose.msra.mxu0 0
    %535 = vmatprep.subr.bf16.mxu0 0
    %536 = vmatpush1.bf16.xpose.msra.mxu0 0
    %537 = vmatprep.subr.bf16.mxu0 0
    %538 = vmatpush1.bf16.xpose.msra.mxu0 0
    %539 = vmatprep.subr.bf16.mxu0 0
    %540 = vmatpush1.bf16.xpose.msra.mxu0 0
    %541 = vmatprep.subr.bf16.mxu0 0
    %542 = vmatpush1.bf16.xpose.msra.mxu0 0
    %543 = vmatprep.subr.bf16.mxu0 0
    %544 = vmatpush1.bf16.xpose.msra.mxu0 0
    %545 = vmatprep.subr.bf16.mxu0 0
    %546 = vmatpush1.bf16.xpose.msra.mxu0 0
    %547 = vmatprep.subr.bf16.mxu0 0
    %548 = vmatpush1.bf16.xpose.msra.mxu0 0
    %549 = vmatprep.subr.bf16.mxu0 0
    %550 = vmatpush1.bf16.xpose.msra.mxu0 0
    %551 = vmatprep.mubr.bf16.mxu0 0
    %552 = vmatmul.mubr.bf16.gmra.mrb[0].mxu0 %v514
    %v553 = vpop.f32.mrb[0].mxu0
    %v554 = vadd.f32 0.0, %v553
    %v555 = vpop.f32.mrb[0].mxu0
    %v556 = vpop.f32.mrb[0].mxu0
    %v557 = vpop.f32.mrb[0].mxu0
    %558 = vdwg.mxu0
    %560 = vrot.lane.b32.xlu0 %v454, 96
    %v561 = vpop.permute.xlu0 %560
    %v563 = vsel %vm463, %v446, 0
    %v566 = vsel %vm463, %v561, 0
    %568 = vmatprep.subr.bf16.mxu0 0
    %569 = vmatpush1.bf16.xpose.msra.mxu0 %v566
    %570 = vmatprep.subr.bf16.mxu0 0
    %571 = vmatpush1.bf16.xpose.msra.mxu0 0
    %572 = vmatprep.subr.bf16.mxu0 0
    %573 = vmatpush1.bf16.xpose.msra.mxu0 0
    %574 = vmatprep.subr.bf16.mxu0 0
    %575 = vmatpush1.bf16.xpose.msra.mxu0 0
    %576 = vmatprep.subr.bf16.mxu0 0
    %577 = vmatpush1.bf16.xpose.msra.mxu0 0
    %578 = vmatprep.subr.bf16.mxu0 0
    %579 = vmatpush1.bf16.xpose.msra.mxu0 0
    %580 = vmatprep.subr.bf16.mxu0 0
    %581 = vmatpush1.bf16.xpose.msra.mxu0 0
    %582 = vmatprep.subr.bf16.mxu0 0
    %583 = vmatpush1.bf16.xpose.msra.mxu0 0
    %584 = vmatprep.subr.bf16.mxu0 0
    %585 = vmatpush1.bf16.xpose.msra.mxu0 0
    %586 = vmatprep.subr.bf16.mxu0 0
    %587 = vmatpush1.bf16.xpose.msra.mxu0 0
    %588 = vmatprep.subr.bf16.mxu0 0
    %589 = vmatpush1.bf16.xpose.msra.mxu0 0
    %590 = vmatprep.subr.bf16.mxu0 0
    %591 = vmatpush1.bf16.xpose.msra.mxu0 0
    %592 = vmatprep.subr.bf16.mxu0 0
    %593 = vmatpush1.bf16.xpose.msra.mxu0 0
    %594 = vmatprep.subr.bf16.mxu0 0
    %595 = vmatpush1.bf16.xpose.msra.mxu0 0
    %596 = vmatprep.subr.bf16.mxu0 0
    %597 = vmatpush1.bf16.xpose.msra.mxu0 0
    %598 = vmatprep.subr.bf16.mxu0 0
    %599 = vmatpush1.bf16.xpose.msra.mxu0 0
    %600 = vmatprep.mubr.bf16.mxu0 0
    %601 = vmatmul.mubr.bf16.gmra.mrb[0].mxu0 %v563
    %v602 = vpop.f32.mrb[0].mxu0
    %v603 = vadd.f32 0.0, %v602
    %v604 = vpop.f32.mrb[0].mxu0
    %v605 = vpop.f32.mrb[0].mxu0
    %v606 = vpop.f32.mrb[0].mxu0
    %607 = vdwg.mxu0
    %609 = vrot.lane.b32.xlu0 %v455, 96
    %v610 = vpop.permute.xlu0 %609
    %v612 = vsel %vm463, %v447, 0
    %v615 = vsel %vm463, %v610, 0
    %617 = vmatprep.subr.bf16.mxu0 0
    %618 = vmatpush1.bf16.xpose.msra.mxu0 %v615
    %619 = vmatprep.subr.bf16.mxu0 0
    %620 = vmatpush1.bf16.xpose.msra.mxu0 0
    %621 = vmatprep.subr.bf16.mxu0 0
    %622 = vmatpush1.bf16.xpose.msra.mxu0 0
    %623 = vmatprep.subr.bf16.mxu0 0
    %624 = vmatpush1.bf16.xpose.msra.mxu0 0
    %625 = vmatprep.subr.bf16.mxu0 0
    %626 = vmatpush1.bf16.xpose.msra.mxu0 0
    %627 = vmatprep.subr.bf16.mxu0 0
    %628 = vmatpush1.bf16.xpose.msra.mxu0 0
    %629 = vmatprep.subr.bf16.mxu0 0
    %630 = vmatpush1.bf16.xpose.msra.mxu0 0
    %631 = vmatprep.subr.bf16.mxu0 0
    %632 = vmatpush1.bf16.xpose.msra.mxu0 0
    %633 = vmatprep.subr.bf16.mxu0 0
    %634 = vmatpush1.bf16.xpose.msra.mxu0 0
    %635 = vmatprep.subr.bf16.mxu0 0
    %636 = vmatpush1.bf16.xpose.msra.mxu0 0
    %637 = vmatprep.subr.bf16.mxu0 0
    %638 = vmatpush1.bf16.xpose.msra.mxu0 0
    %639 = vmatprep.subr.bf16.mxu0 0
    %640 = vmatpush1.bf16.xpose.msra.mxu0 0
    %641 = vmatprep.subr.bf16.mxu0 0
    %642 = vmatpush1.bf16.xpose.msra.mxu0 0
    %643 = vmatprep.subr.bf16.mxu0 0
    %644 = vmatpush1.bf16.xpose.msra.mxu0 0
    %645 = vmatprep.subr.bf16.mxu0 0
    %646 = vmatpush1.bf16.xpose.msra.mxu0 0
    %647 = vmatprep.subr.bf16.mxu0 0
    %648 = vmatpush1.bf16.xpose.msra.mxu0 0
    %649 = vmatprep.mubr.bf16.mxu0 0
    %650 = vmatmul.mubr.bf16.gmra.mrb[0].mxu0 %v612
    %v651 = vpop.f32.mrb[0].mxu0
    %v652 = vadd.f32 0.0, %v651
    %v653 = vpop.f32.mrb[0].mxu0
    %v654 = vpop.f32.mrb[0].mxu0
    %v655 = vpop.f32.mrb[0].mxu0
    %656 = vdwg.mxu0
    %658 = vrot.lane.b32.xlu0 %v456, 96
    %v659 = vpop.permute.xlu0 %658
    %v661 = vsel %vm463, %v448, 0
    %v664 = vsel %vm463, %v659, 0
    %666 = vmatprep.subr.bf16.mxu0 0
    %667 = vmatpush1.bf16.xpose.msra.mxu0 %v664
    %668 = vmatprep.subr.bf16.mxu0 0
    %669 = vmatpush1.bf16.xpose.msra.mxu0 0
    %670 = vmatprep.subr.bf16.mxu0 0
    %671 = vmatpush1.bf16.xpose.msra.mxu0 0
    %672 = vmatprep.subr.bf16.mxu0 0
    %673 = vmatpush1.bf16.xpose.msra.mxu0 0
    %674 = vmatprep.subr.bf16.mxu0 0
    %675 = vmatpush1.bf16.xpose.msra.mxu0 0
    %676 = vmatprep.subr.bf16.mxu0 0
    %677 = vmatpush1.bf16.xpose.msra.mxu0 0
    %678 = vmatprep.subr.bf16.mxu0 0
    %679 = vmatpush1.bf16.xpose.msra.mxu0 0
    %680 = vmatprep.subr.bf16.mxu0 0
    %681 = vmatpush1.bf16.xpose.msra.mxu0 0
    %682 = vmatprep.subr.bf16.mxu0 0
    %683 = vmatpush1.bf16.xpose.msra.mxu0 0
    %684 = vmatprep.subr.bf16.mxu0 0
    %685 = vmatpush1.bf16.xpose.msra.mxu0 0
    %686 = vmatprep.subr.bf16.mxu0 0
    %687 = vmatpush1.bf16.xpose.msra.mxu0 0
    %688 = vmatprep.subr.bf16.mxu0 0
    %689 = vmatpush1.bf16.xpose.msra.mxu0 0
    %690 = vmatprep.subr.bf16.mxu0 0
    %691 = vmatpush1.bf16.xpose.msra.mxu0 0
    %692 = vmatprep.subr.bf16.mxu0 0
    %693 = vmatpush1.bf16.xpose.msra.mxu0 0
    %694 = vmatprep.subr.bf16.mxu0 0
    %695 = vmatpush1.bf16.xpose.msra.mxu0 0
    %696 = vmatprep.subr.bf16.mxu0 0
    %697 = vmatpush1.bf16.xpose.msra.mxu0 0
    %698 = vmatprep.mubr.bf16.mxu0 0
    %699 = vmatmul.mubr.bf16.gmra.mrb[0].mxu0 %v661
    %v700 = vpop.f32.mrb[0].mxu0
    %v701 = vadd.f32 0.0, %v700
    %v702 = vpop.f32.mrb[0].mxu0
    %v703 = vpop.f32.mrb[0].mxu0
    %v704 = vpop.f32.mrb[0].mxu0
    %705 = vdwg.mxu0
    %707 = vrot.lane.b32.xlu0 %v457, 96
    %v708 = vpop.permute.xlu0 %707
    %v710 = vsel %vm463, %v449, 0
    %v713 = vsel %vm463, %v708, 0
    %715 = vmatprep.subr.bf16.mxu0 0
    %716 = vmatpush1.bf16.xpose.msra.mxu0 %v713
    %717 = vmatprep.subr.bf16.mxu0 0
    %718 = vmatpush1.bf16.xpose.msra.mxu0 0
    %719 = vmatprep.subr.bf16.mxu0 0
    %720 = vmatpush1.bf16.xpose.msra.mxu0 0
    %721 = vmatprep.subr.bf16.mxu0 0
    %722 = vmatpush1.bf16.xpose.msra.mxu0 0
    %723 = vmatprep.subr.bf16.mxu0 0
    %724 = vmatpush1.bf16.xpose.msra.mxu0 0
    %725 = vmatprep.subr.bf16.mxu0 0
    %726 = vmatpush1.bf16.xpose.msra.mxu0 0
    %727 = vmatprep.subr.bf16.mxu0 0
    %728 = vmatpush1.bf16.xpose.msra.mxu0 0
    %729 = vmatprep.subr.bf16.mxu0 0
    %730 = vmatpush1.bf16.xpose.msra.mxu0 0
    %731 = vmatprep.subr.bf16.mxu0 0
    %732 = vmatpush1.bf16.xpose.msra.mxu0 0
    %733 = vmatprep.subr.bf16.mxu0 0
    %734 = vmatpush1.bf16.xpose.msra.mxu0 0
    %735 = vmatprep.subr.bf16.mxu0 0
    %736 = vmatpush1.bf16.xpose.msra.mxu0 0
    %737 = vmatprep.subr.bf16.mxu0 0
    %738 = vmatpush1.bf16.xpose.msra.mxu0 0
    %739 = vmatprep.subr.bf16.mxu0 0
    %740 = vmatpush1.bf16.xpose.msra.mxu0 0
    %741 = vmatprep.subr.bf16.mxu0 0
    %742 = vmatpush1.bf16.xpose.msra.mxu0 0
    %743 = vmatprep.subr.bf16.mxu0 0
    %744 = vmatpush1.bf16.xpose.msra.mxu0 0
    %745 = vmatprep.subr.bf16.mxu0 0
    %746 = vmatpush1.bf16.xpose.msra.mxu0 0
    %747 = vmatprep.mubr.bf16.mxu0 0
    %748 = vmatmul.mubr.bf16.gmra.mrb[0].mxu0 %v710
    %v749 = vpop.f32.mrb[0].mxu0
    %v750 = vadd.f32 0.0, %v749
    %v751 = vpop.f32.mrb[0].mxu0
    %v752 = vpop.f32.mrb[0].mxu0
    %v753 = vpop.f32.mrb[0].mxu0
    %754 = vdwg.mxu0
    %756 = vrot.lane.b32.xlu0 %v458, 96
    %v757 = vpop.permute.xlu0 %756
    %v759 = vsel %vm463, %v450, 0
    %v762 = vsel %vm463, %v757, 0
    %764 = vmatprep.subr.bf16.mxu0 0
    %765 = vmatpush1.bf16.xpose.msra.mxu0 %v762
    %766 = vmatprep.subr.bf16.mxu0 0
    %767 = vmatpush1.bf16.xpose.msra.mxu0 0
    %768 = vmatprep.subr.bf16.mxu0 0
    %769 = vmatpush1.bf16.xpose.msra.mxu0 0
    %770 = vmatprep.subr.bf16.mxu0 0
    %771 = vmatpush1.bf16.xpose.msra.mxu0 0
    %772 = vmatprep.subr.bf16.mxu0 0
    %773 = vmatpush1.bf16.xpose.msra.mxu0 0
    %774 = vmatprep.subr.bf16.mxu0 0
    %775 = vmatpush1.bf16.xpose.msra.mxu0 0
    %776 = vmatprep.subr.bf16.mxu0 0
    %777 = vmatpush1.bf16.xpose.msra.mxu0 0
    %778 = vmatprep.subr.bf16.mxu0 0
    %779 = vmatpush1.bf16.xpose.msra.mxu0 0
    %780 = vmatprep.subr.bf16.mxu0 0
    %781 = vmatpush1.bf16.xpose.msra.mxu0 0
    %782 = vmatprep.subr.bf16.mxu0 0
    %783 = vmatpush1.bf16.xpose.msra.mxu0 0
    %784 = vmatprep.subr.bf16.mxu0 0
    %785 = vmatpush1.bf16.xpose.msra.mxu0 0
    %786 = vmatprep.subr.bf16.mxu0 0
    %787 = vmatpush1.bf16.xpose.msra.mxu0 0
    %788 = vmatprep.subr.bf16.mxu0 0
    %789 = vmatpush1.bf16.xpose.msra.mxu0 0
    %790 = vmatprep.subr.bf16.mxu0 0
    %791 = vmatpush1.bf16.xpose.msra.mxu0 0
    %792 = vmatprep.subr.bf16.mxu0 0
    %793 = vmatpush1.bf16.xpose.msra.mxu0 0
    %794 = vmatprep.subr.bf16.mxu0 0
    %795 = vmatpush1.bf16.xpose.msra.mxu0 0
    %796 = vmatprep.mubr.bf16.mxu0 0
    %797 = vmatmul.mubr.bf16.gmra.mrb[0].mxu0 %v759
    %v798 = vpop.f32.mrb[0].mxu0
    %v799 = vadd.f32 0.0, %v798
    %v800 = vpop.f32.mrb[0].mxu0
    %v801 = vpop.f32.mrb[0].mxu0
    %v802 = vpop.f32.mrb[0].mxu0
    %803 = vdwg.mxu0
    %805 = vrot.lane.b32.xlu0 %v459, 96
    %v806 = vpop.permute.xlu0 %805
    %v808 = vsel %vm463, %v451, 0
    %v811 = vsel %vm463, %v806, 0
    %813 = vmatprep.subr.bf16.mxu0 0
    %814 = vmatpush1.bf16.xpose.msra.mxu0 %v811
    %815 = vmatprep.subr.bf16.mxu0 0
    %816 = vmatpush1.bf16.xpose.msra.mxu0 0
    %817 = vmatprep.subr.bf16.mxu0 0
    %818 = vmatpush1.bf16.xpose.msra.mxu0 0
    %819 = vmatprep.subr.bf16.mxu0 0
    %820 = vmatpush1.bf16.xpose.msra.mxu0 0
    %821 = vmatprep.subr.bf16.mxu0 0
    %822 = vmatpush1.bf16.xpose.msra.mxu0 0
    %823 = vmatprep.subr.bf16.mxu0 0
    %824 = vmatpush1.bf16.xpose.msra.mxu0 0
    %825 = vmatprep.subr.bf16.mxu0 0
    %826 = vmatpush1.bf16.xpose.msra.mxu0 0
    %827 = vmatprep.subr.bf16.mxu0 0
    %828 = vmatpush1.bf16.xpose.msra.mxu0 0
    %829 = vmatprep.subr.bf16.mxu0 0
    %830 = vmatpush1.bf16.xpose.msra.mxu0 0
    %831 = vmatprep.subr.bf16.mxu0 0
    %832 = vmatpush1.bf16.xpose.msra.mxu0 0
    %833 = vmatprep.subr.bf16.mxu0 0
    %834 = vmatpush1.bf16.xpose.msra.mxu0 0
    %835 = vmatprep.subr.bf16.mxu0 0
    %836 = vmatpush1.bf16.xpose.msra.mxu0 0
    %837 = vmatprep.subr.bf16.mxu0 0
    %838 = vmatpush1.bf16.xpose.msra.mxu0 0
    %839 = vmatprep.subr.bf16.mxu0 0
    %840 = vmatpush1.bf16.xpose.msra.mxu0 0
    %841 = vmatprep.subr.bf16.mxu0 0
    %842 = vmatpush1.bf16.xpose.msra.mxu0 0
    %843 = vmatprep.subr.bf16.mxu0 0
    %844 = vmatpush1.bf16.xpose.msra.mxu0 0
    %845 = vmatprep.mubr.bf16.mxu0 0
    %846 = vmatmul.mubr.bf16.gmra.mrb[0].mxu0 %v808
    %v847 = vpop.f32.mrb[0].mxu0
    %v848 = vadd.f32 0.0, %v847
    %v849 = vpop.f32.mrb[0].mxu0
    %v850 = vpop.f32.mrb[0].mxu0
    %v851 = vpop.f32.mrb[0].mxu0
    %852 = vdwg.mxu0
    %v853 = vmul.f32 %v505, 0.35355338
    %v854 = vmul.f32 %v554, 0.35355338
    %v855 = vmul.f32 %v603, 0.35355338
    %v856 = vmul.f32 %v652, 0.35355338
    %v857 = vmul.f32 %v701, 0.35355338
    %v858 = vmul.f32 %v750, 0.35355338
    %v859 = vmul.f32 %v799, 0.35355338
    %v860 = vmul.f32 %v848, 0.35355338
    %vm861 = vcmask 130048
    %v862 = vsel %vm861, %v853, -inf
    %863 = vmax.xlane.f32.xlu0 %v862
    %v864 = vpop.xlane.xlu0 %863
    %v865 = vsel %vm861, %v854, -inf
    %866 = vmax.xlane.f32.xlu0 %v865
    %v867 = vpop.xlane.xlu0 %866
    %v868 = vsel %vm861, %v855, -inf
    %869 = vmax.xlane.f32.xlu0 %v868
    %v870 = vpop.xlane.xlu0 %869
    %v871 = vsel %vm861, %v856, -inf
    %872 = vmax.xlane.f32.xlu0 %v871
    %v873 = vpop.xlane.xlu0 %872
    %v874 = vsel %vm861, %v857, -inf
    %875 = vmax.xlane.f32.xlu0 %v874
    %v876 = vpop.xlane.xlu0 %875
    %v877 = vsel %vm861, %v858, -inf
    %878 = vmax.xlane.f32.xlu0 %v877
    %v879 = vpop.xlane.xlu0 %878
    %v880 = vsel %vm861, %v859, -inf
    %881 = vmax.xlane.f32.xlu0 %v880
    %v882 = vpop.xlane.xlu0 %881
    %v883 = vsel %vm861, %v860, -inf
    %884 = vmax.xlane.f32.xlu0 %v883
    %v885 = vpop.xlane.xlu0 %884
    %v886 = vsub.f32 %v853, %v864
    %v887 = vsub.f32 %v854, %v867
    %v888 = vsub.f32 %v855, %v870
    %v889 = vsub.f32 %v856, %v873
    %v890 = vsub.f32 %v857, %v876
    %v891 = vsub.f32 %v858, %v879
    %v892 = vsub.f32 %v859, %v882
    %v893 = vsub.f32 %v860, %v885
    %v894 = vmul.f32 %v886, 1.442695
    %v895 = vpow.pop %v894
    %v896 = vmul.f32 %v887, 1.442695
    %v897 = vpow.pop %v896
    %v898 = vmul.f32 %v888, 1.442695
    %v899 = vpow.pop %v898
    %v900 = vmul.f32 %v889, 1.442695
    %v901 = vpow.pop %v900
    %v902 = vmul.f32 %v890, 1.442695
    %v903 = vpow.pop %v902
    %v904 = vmul.f32 %v891, 1.442695
    %v905 = vpow.pop %v904
    %v906 = vmul.f32 %v892, 1.442695
    %v907 = vpow.pop %v906
    %v908 = vmul.f32 %v893, 1.442695
    %v909 = vpow.pop %v908
    %v910 = vsel %vm861, %v895, 0.0
    %911 = vadd.xlane.f32.xlu0 %v910
    %v912 = vpop.xlane.xlu0 %911
    %v913 = vsel %vm861, %v897, 0.0
    %914 = vadd.xlane.f32.xlu0 %v913
    %v915 = vpop.xlane.xlu0 %914
    %v916 = vsel %vm861, %v899, 0.0
    %917 = vadd.xlane.f32.xlu0 %v916
    %v918 = vpop.xlane.xlu0 %917
    %v919 = vsel %vm861, %v901, 0.0
    %920 = vadd.xlane.f32.xlu0 %v919
    %v921 = vpop.xlane.xlu0 %920
    %v922 = vsel %vm861, %v903, 0.0
    %923 = vadd.xlane.f32.xlu0 %v922
    %v924 = vpop.xlane.xlu0 %923
    %v925 = vsel %vm861, %v905, 0.0
    %926 = vadd.xlane.f32.xlu0 %v925
    %v927 = vpop.xlane.xlu0 %926
    %v928 = vsel %vm861, %v907, 0.0
    %929 = vadd.xlane.f32.xlu0 %v928
    %v930 = vpop.xlane.xlu0 %929
    %v931 = vsel %vm861, %v909, 0.0
    %932 = vadd.xlane.f32.xlu0 %v931
    %v933 = vpop.xlane.xlu0 %932
    %v934 = vrcp.pop %v912
    %v935 = vrcp.pop %v915
    %v936 = vrcp.pop %v918
    %v937 = vrcp.pop %v921
    %v938 = vrcp.pop %v924
    %v939 = vrcp.pop %v927
    %v940 = vrcp.pop %v930
    %v941 = vrcp.pop %v933
    %v942 = vmul.f32 %v895, %v934
    %v943 = vmul.f32 %v897, %v935
    %v944 = vmul.f32 %v899, %v936
    %v945 = vmul.f32 %v901, %v937
    %v946 = vmul.f32 %v903, %v938
    %v947 = vmul.f32 %v905, %v939
    %v948 = vmul.f32 %v907, %v940
    %v949 = vmul.f32 %v909, %v941
    %v950 = vpack.c.bf16 %v942, %v942
    %v951 = vpack.c.bf16 %v943, %v943
    %v952 = vpack.c.bf16 %v944, %v944
    %v953 = vpack.c.bf16 %v945, %v945
    %v954 = vpack.c.bf16 %v946, %v946
    %v955 = vpack.c.bf16 %v947, %v947
    %v956 = vpack.c.bf16 %v948, %v948
    %v957 = vpack.c.bf16 %v949, %v949
    %v958 = vpack.c.bf16 %v333, %v330
    %v959 = vpack.c.bf16 %v341, %v338
    %v960 = vpack.c.bf16 %v411, %v409
    %v961 = vpack.c.bf16 %v415, %v413
    %v962 = vpack.c.bf16 %v423, %v421
    %v963 = vpack.c.bf16 %v427, %v425
    %v964 = vpack.c.bf16 %v435, %v433
    %v965 = vpack.c.bf16 %v439, %v437
    %967 = vrot.lane.b32.xlu0 %v958, 64
    %v968 = vpop.permute.xlu0 %967
    %v971 = vsel %vm861, %v950, 0
    %973 = vmatprep.subr.bf16.mxu0 0
    %974 = vmatpush1.bf16.msra.mxu0 %v968
    %975 = vmatprep.subr.bf16.mxu0 0
    %976 = vmatpush1.bf16.msra.mxu0 0
    %977 = vmatprep.subr.bf16.mxu0 0
    %978 = vmatpush1.bf16.msra.mxu0 0
    %979 = vmatprep.subr.bf16.mxu0 0
    %980 = vmatpush1.bf16.msra.mxu0 0
    %981 = vmatprep.subr.bf16.mxu0 0
    %982 = vmatpush1.bf16.msra.mxu0 0
    %983 = vmatprep.subr.bf16.mxu0 0
    %984 = vmatpush1.bf16.msra.mxu0 0
    %985 = vmatprep.subr.bf16.mxu0 0
    %986 = vmatpush1.bf16.msra.mxu0 0
    %987 = vmatprep.subr.bf16.mxu0 0
    %988 = vmatpush1.bf16.msra.mxu0 0
    %989 = vmatprep.subr.bf16.mxu0 0
    %990 = vmatpush1.bf16.msra.mxu0 0
    %991 = vmatprep.subr.bf16.mxu0 0
    %992 = vmatpush1.bf16.msra.mxu0 0
    %993 = vmatprep.subr.bf16.mxu0 0
    %994 = vmatpush1.bf16.msra.mxu0 0
    %995 = vmatprep.subr.bf16.mxu0 0
    %996 = vmatpush1.bf16.msra.mxu0 0
    %997 = vmatprep.subr.bf16.mxu0 0
    %998 = vmatpush1.bf16.msra.mxu0 0
    %999 = vmatprep.subr.bf16.mxu0 0
    %1000 = vmatpush1.bf16.msra.mxu0 0
    %1001 = vmatprep.subr.bf16.mxu0 0
    %1002 = vmatpush1.bf16.msra.mxu0 0
    %1003 = vmatprep.subr.bf16.mxu0 0
    %1004 = vmatpush1.bf16.msra.mxu0 0
    %1005 = vmatprep.mubr.bf16.mxu0 0
    %1006 = vmatmul.mubr.bf16.gmra.mrb[0].mxu0 %v971
    %v1007 = vpop.f32.mrb[0].mxu0
    %v1008 = vadd.f32 0.0, %v1007
    %v1009 = vpop.f32.mrb[0].mxu0
    %v1010 = vpop.f32.mrb[0].mxu0
    %v1011 = vpop.f32.mrb[0].mxu0
    %1012 = vdwg.mxu0
    %1014 = vrot.lane.b32.xlu0 %v959, 64
    %v1015 = vpop.permute.xlu0 %1014
    %v1018 = vsel %vm861, %v951, 0
    %1020 = vmatprep.subr.bf16.mxu0 0
    %1021 = vmatpush1.bf16.msra.mxu0 %v1015
    %1022 = vmatprep.subr.bf16.mxu0 0
    %1023 = vmatpush1.bf16.msra.mxu0 0
    %1024 = vmatprep.subr.bf16.mxu0 0
    %1025 = vmatpush1.bf16.msra.mxu0 0
    %1026 = vmatprep.subr.bf16.mxu0 0
    %1027 = vmatpush1.bf16.msra.mxu0 0
    %1028 = vmatprep.subr.bf16.mxu0 0
    %1029 = vmatpush1.bf16.msra.mxu0 0
    %1030 = vmatprep.subr.bf16.mxu0 0
    %1031 = vmatpush1.bf16.msra.mxu0 0
    %1032 = vmatprep.subr.bf16.mxu0 0
    %1033 = vmatpush1.bf16.msra.mxu0 0
    %1034 = vmatprep.subr.bf16.mxu0 0
    %1035 = vmatpush1.bf16.msra.mxu0 0
    %1036 = vmatprep.subr.bf16.mxu0 0
    %1037 = vmatpush1.bf16.msra.mxu0 0
    %1038 = vmatprep.subr.bf16.mxu0 0
    %1039 = vmatpush1.bf16.msra.mxu0 0
    %1040 = vmatprep.subr.bf16.mxu0 0
    %1041 = vmatpush1.bf16.msra.mxu0 0
    %1042 = vmatprep.subr.bf16.mxu0 0
    %1043 = vmatpush1.bf16.msra.mxu0 0
    %1044 = vmatprep.subr.bf16.mxu0 0
    %1045 = vmatpush1.bf16.msra.mxu0 0
    %1046 = vmatprep.subr.bf16.mxu0 0
    %1047 = vmatpush1.bf16.msra.mxu0 0
    %1048 = vmatprep.subr.bf16.mxu0 0
    %1049 = vmatpush1.bf16.msra.mxu0 0
    %1050 = vmatprep.subr.bf16.mxu0 0
    %1051 = vmatpush1.bf16.msra.mxu0 0
    %1052 = vmatprep.mubr.bf16.mxu0 0
    %1053 = vmatmul.mubr.bf16.gmra.mrb[0].mxu0 %v1018
    %v1054 = vpop.f32.mrb[0].mxu0
    %v1055 = vadd.f32 0.0, %v1054
    %v1056 = vpop.f32.mrb[0].mxu0
    %v1057 = vpop.f32.mrb[0].mxu0
    %v1058 = vpop.f32.mrb[0].mxu0
    %1059 = vdwg.mxu0
    %1061 = vrot.lane.b32.xlu0 %v960, 64
    %v1062 = vpop.permute.xlu0 %1061
    %v1065 = vsel %vm861, %v952, 0
    %1067 = vmatprep.subr.bf16.mxu0 0
    %1068 = vmatpush1.bf16.msra.mxu0 %v1062
    %1069 = vmatprep.subr.bf16.mxu0 0
    %1070 = vmatpush1.bf16.msra.mxu0 0
    %1071 = vmatprep.subr.bf16.mxu0 0
    %1072 = vmatpush1.bf16.msra.mxu0 0
    %1073 = vmatprep.subr.bf16.mxu0 0
    %1074 = vmatpush1.bf16.msra.mxu0 0
    %1075 = vmatprep.subr.bf16.mxu0 0
    %1076 = vmatpush1.bf16.msra.mxu0 0
    %1077 = vmatprep.subr.bf16.mxu0 0
    %1078 = vmatpush1.bf16.msra.mxu0 0
    %1079 = vmatprep.subr.bf16.mxu0 0
    %1080 = vmatpush1.bf16.msra.mxu0 0
    %1081 = vmatprep.subr.bf16.mxu0 0
    %1082 = vmatpush1.bf16.msra.mxu0 0
    %1083 = vmatprep.subr.bf16.mxu0 0
    %1084 = vmatpush1.bf16.msra.mxu0 0
    %1085 = vmatprep.subr.bf16.mxu0 0
    %1086 = vmatpush1.bf16.msra.mxu0 0
    %1087 = vmatprep.subr.bf16.mxu0 0
    %1088 = vmatpush1.bf16.msra.mxu0 0
    %1089 = vmatprep.subr.bf16.mxu0 0
    %1090 = vmatpush1.bf16.msra.mxu0 0
    %1091 = vmatprep.subr.bf16.mxu0 0
    %1092 = vmatpush1.bf16.msra.mxu0 0
    %1093 = vmatprep.subr.bf16.mxu0 0
    %1094 = vmatpush1.bf16.msra.mxu0 0
    %1095 = vmatprep.subr.bf16.mxu0 0
    %1096 = vmatpush1.bf16.msra.mxu0 0
    %1097 = vmatprep.subr.bf16.mxu0 0
    %1098 = vmatpush1.bf16.msra.mxu0 0
    %1099 = vmatprep.mubr.bf16.mxu0 0
    %1100 = vmatmul.mubr.bf16.gmra.mrb[0].mxu0 %v1065
    %v1101 = vpop.f32.mrb[0].mxu0
    %v1102 = vadd.f32 0.0, %v1101
    %v1103 = vpop.f32.mrb[0].mxu0
    %v1104 = vpop.f32.mrb[0].mxu0
    %v1105 = vpop.f32.mrb[0].mxu0
    %1106 = vdwg.mxu0
    %1108 = vrot.lane.b32.xlu0 %v961, 64
    %v1109 = vpop.permute.xlu0 %1108
    %v1112 = vsel %vm861, %v953, 0
    %1114 = vmatprep.subr.bf16.mxu0 0
    %1115 = vmatpush1.bf16.msra.mxu0 %v1109
    %1116 = vmatprep.subr.bf16.mxu0 0
    %1117 = vmatpush1.bf16.msra.mxu0 0
    %1118 = vmatprep.subr.bf16.mxu0 0
    %1119 = vmatpush1.bf16.msra.mxu0 0
    %1120 = vmatprep.subr.bf16.mxu0 0
    %1121 = vmatpush1.bf16.msra.mxu0 0
    %1122 = vmatprep.subr.bf16.mxu0 0
    %1123 = vmatpush1.bf16.msra.mxu0 0
    %1124 = vmatprep.subr.bf16.mxu0 0
    %1125 = vmatpush1.bf16.msra.mxu0 0
    %1126 = vmatprep.subr.bf16.mxu0 0
    %1127 = vmatpush1.bf16.msra.mxu0 0
    %1128 = vmatprep.subr.bf16.mxu0 0
    %1129 = vmatpush1.bf16.msra.mxu0 0
    %1130 = vmatprep.subr.bf16.mxu0 0
    %1131 = vmatpush1.bf16.msra.mxu0 0
    %1132 = vmatprep.subr.bf16.mxu0 0
    %1133 = vmatpush1.bf16.msra.mxu0 0
    %1134 = vmatprep.subr.bf16.mxu0 0
    %1135 = vmatpush1.bf16.msra.mxu0 0
    %1136 = vmatprep.subr.bf16.mxu0 0
    %1137 = vmatpush1.bf16.msra.mxu0 0
    %1138 = vmatprep.subr.bf16.mxu0 0
    %1139 = vmatpush1.bf16.msra.mxu0 0
    %1140 = vmatprep.subr.bf16.mxu0 0
    %1141 = vmatpush1.bf16.msra.mxu0 0
    %1142 = vmatprep.subr.bf16.mxu0 0
    %1143 = vmatpush1.bf16.msra.mxu0 0
    %1144 = vmatprep.subr.bf16.mxu0 0
    %1145 = vmatpush1.bf16.msra.mxu0 0
    %1146 = vmatprep.mubr.bf16.mxu0 0
    %1147 = vmatmul.mubr.bf16.gmra.mrb[0].mxu0 %v1112
    %v1148 = vpop.f32.mrb[0].mxu0
    %v1149 = vadd.f32 0.0, %v1148
    %v1150 = vpop.f32.mrb[0].mxu0
    %v1151 = vpop.f32.mrb[0].mxu0
    %v1152 = vpop.f32.mrb[0].mxu0
    %1153 = vdwg.mxu0
    %1155 = vrot.lane.b32.xlu0 %v962, 64
    %v1156 = vpop.permute.xlu0 %1155
    %v1159 = vsel %vm861, %v954, 0
    %1161 = vmatprep.subr.bf16.mxu0 0
    %1162 = vmatpush1.bf16.msra.mxu0 %v1156
    %1163 = vmatprep.subr.bf16.mxu0 0
    %1164 = vmatpush1.bf16.msra.mxu0 0
    %1165 = vmatprep.subr.bf16.mxu0 0
    %1166 = vmatpush1.bf16.msra.mxu0 0
    %1167 = vmatprep.subr.bf16.mxu0 0
    %1168 = vmatpush1.bf16.msra.mxu0 0
    %1169 = vmatprep.subr.bf16.mxu0 0
    %1170 = vmatpush1.bf16.msra.mxu0 0
    %1171 = vmatprep.subr.bf16.mxu0 0
    %1172 = vmatpush1.bf16.msra.mxu0 0
    %1173 = vmatprep.subr.bf16.mxu0 0
    %1174 = vmatpush1.bf16.msra.mxu0 0
    %1175 = vmatprep.subr.bf16.mxu0 0
    %1176 = vmatpush1.bf16.msra.mxu0 0
    %1177 = vmatprep.subr.bf16.mxu0 0
    %1178 = vmatpush1.bf16.msra.mxu0 0
    %1179 = vmatprep.subr.bf16.mxu0 0
    %1180 = vmatpush1.bf16.msra.mxu0 0
    %1181 = vmatprep.subr.bf16.mxu0 0
    %1182 = vmatpush1.bf16.msra.mxu0 0
    %1183 = vmatprep.subr.bf16.mxu0 0
    %1184 = vmatpush1.bf16.msra.mxu0 0
    %1185 = vmatprep.subr.bf16.mxu0 0
    %1186 = vmatpush1.bf16.msra.mxu0 0
    %1187 = vmatprep.subr.bf16.mxu0 0
    %1188 = vmatpush1.bf16.msra.mxu0 0
    %1189 = vmatprep.subr.bf16.mxu0 0
    %1190 = vmatpush1.bf16.msra.mxu0 0
    %1191 = vmatprep.subr.bf16.mxu0 0
    %1192 = vmatpush1.bf16.msra.mxu0 0
    %1193 = vmatprep.mubr.bf16.mxu0 0
    %1194 = vmatmul.mubr.bf16.gmra.mrb[0].mxu0 %v1159
    %v1195 = vpop.f32.mrb[0].mxu0
    %v1196 = vadd.f32 0.0, %v1195
    %v1197 = vpop.f32.mrb[0].mxu0
    %v1198 = vpop.f32.mrb[0].mxu0
    %v1199 = vpop.f32.mrb[0].mxu0
    %1200 = vdwg.mxu0
    %1202 = vrot.lane.b32.xlu0 %v963, 64
    %v1203 = vpop.permute.xlu0 %1202
    %v1206 = vsel %vm861, %v955, 0
    %1208 = vmatprep.subr.bf16.mxu0 0
    %1209 = vmatpush1.bf16.msra.mxu0 %v1203
    %1210 = vmatprep.subr.bf16.mxu0 0
    %1211 = vmatpush1.bf16.msra.mxu0 0
    %1212 = vmatprep.subr.bf16.mxu0 0
    %1213 = vmatpush1.bf16.msra.mxu0 0
    %1214 = vmatprep.subr.bf16.mxu0 0
    %1215 = vmatpush1.bf16.msra.mxu0 0
    %1216 = vmatprep.subr.bf16.mxu0 0
    %1217 = vmatpush1.bf16.msra.mxu0 0
    %1218 = vmatprep.subr.bf16.mxu0 0
    %1219 = vmatpush1.bf16.msra.mxu0 0
    %1220 = vmatprep.subr.bf16.mxu0 0
    %1221 = vmatpush1.bf16.msra.mxu0 0
    %1222 = vmatprep.subr.bf16.mxu0 0
    %1223 = vmatpush1.bf16.msra.mxu0 0
    %1224 = vmatprep.subr.bf16.mxu0 0
    %1225 = vmatpush1.bf16.msra.mxu0 0
    %1226 = vmatprep.subr.bf16.mxu0 0
    %1227 = vmatpush1.bf16.msra.mxu0 0
    %1228 = vmatprep.subr.bf16.mxu0 0
    %1229 = vmatpush1.bf16.msra.mxu0 0
    %1230 = vmatprep.subr.bf16.mxu0 0
    %1231 = vmatpush1.bf16.msra.mxu0 0
    %1232 = vmatprep.subr.bf16.mxu0 0
    %1233 = vmatpush1.bf16.msra.mxu0 0
    %1234 = vmatprep.subr.bf16.mxu0 0
    %1235 = vmatpush1.bf16.msra.mxu0 0
    %1236 = vmatprep.subr.bf16.mxu0 0
    %1237 = vmatpush1.bf16.msra.mxu0 0
    %1238 = vmatprep.subr.bf16.mxu0 0
    %1239 = vmatpush1.bf16.msra.mxu0 0
    %1240 = vmatprep.mubr.bf16.mxu0 0
    %1241 = vmatmul.mubr.bf16.gmra.mrb[0].mxu0 %v1206
    %v1242 = vpop.f32.mrb[0].mxu0
    %v1243 = vadd.f32 0.0, %v1242
    %v1244 = vpop.f32.mrb[0].mxu0
    %v1245 = vpop.f32.mrb[0].mxu0
    %v1246 = vpop.f32.mrb[0].mxu0
    %1247 = vdwg.mxu0
    %1249 = vrot.lane.b32.xlu0 %v964, 64
    %v1250 = vpop.permute.xlu0 %1249
    %v1253 = vsel %vm861, %v956, 0
    %1255 = vmatprep.subr.bf16.mxu0 0
    %1256 = vmatpush1.bf16.msra.mxu0 %v1250
    %1257 = vmatprep.subr.bf16.mxu0 0
    %1258 = vmatpush1.bf16.msra.mxu0 0
    %1259 = vmatprep.subr.bf16.mxu0 0
    %1260 = vmatpush1.bf16.msra.mxu0 0
    %1261 = vmatprep.subr.bf16.mxu0 0
    %1262 = vmatpush1.bf16.msra.mxu0 0
    %1263 = vmatprep.subr.bf16.mxu0 0
    %1264 = vmatpush1.bf16.msra.mxu0 0
    %1265 = vmatprep.subr.bf16.mxu0 0
    %1266 = vmatpush1.bf16.msra.mxu0 0
    %1267 = vmatprep.subr.bf16.mxu0 0
    %1268 = vmatpush1.bf16.msra.mxu0 0
    %1269 = vmatprep.subr.bf16.mxu0 0
    %1270 = vmatpush1.bf16.msra.mxu0 0
    %1271 = vmatprep.subr.bf16.mxu0 0
    %1272 = vmatpush1.bf16.msra.mxu0 0
    %1273 = vmatprep.subr.bf16.mxu0 0
    %1274 = vmatpush1.bf16.msra.mxu0 0
    %1275 = vmatprep.subr.bf16.mxu0 0
    %1276 = vmatpush1.bf16.msra.mxu0 0
    %1277 = vmatprep.subr.bf16.mxu0 0
    %1278 = vmatpush1.bf16.msra.mxu0 0
    %1279 = vmatprep.subr.bf16.mxu0 0
    %1280 = vmatpush1.bf16.msra.mxu0 0
    %1281 = vmatprep.subr.bf16.mxu0 0
    %1282 = vmatpush1.bf16.msra.mxu0 0
    %1283 = vmatprep.subr.bf16.mxu0 0
    %1284 = vmatpush1.bf16.msra.mxu0 0
    %1285 = vmatprep.subr.bf16.mxu0 0
    %1286 = vmatpush1.bf16.msra.mxu0 0
    %1287 = vmatprep.mubr.bf16.mxu0 0
    %1288 = vmatmul.mubr.bf16.gmra.mrb[0].mxu0 %v1253
    %v1289 = vpop.f32.mrb[0].mxu0
    %v1290 = vadd.f32 0.0, %v1289
    %v1291 = vpop.f32.mrb[0].mxu0
    %v1292 = vpop.f32.mrb[0].mxu0
    %v1293 = vpop.f32.mrb[0].mxu0
    %1294 = vdwg.mxu0
    %1296 = vrot.lane.b32.xlu0 %v965, 64
    %v1297 = vpop.permute.xlu0 %1296
    %v1300 = vsel %vm861, %v957, 0
    %1302 = vmatprep.subr.bf16.mxu0 0
    %1303 = vmatpush1.bf16.msra.mxu0 %v1297
    %1304 = vmatprep.subr.bf16.mxu0 0
    %1305 = vmatpush1.bf16.msra.mxu0 0
    %1306 = vmatprep.subr.bf16.mxu0 0
    %1307 = vmatpush1.bf16.msra.mxu0 0
    %1308 = vmatprep.subr.bf16.mxu0 0
    %1309 = vmatpush1.bf16.msra.mxu0 0
    %1310 = vmatprep.subr.bf16.mxu0 0
    %1311 = vmatpush1.bf16.msra.mxu0 0
    %1312 = vmatprep.subr.bf16.mxu0 0
    %1313 = vmatpush1.bf16.msra.mxu0 0
    %1314 = vmatprep.subr.bf16.mxu0 0
    %1315 = vmatpush1.bf16.msra.mxu0 0
    %1316 = vmatprep.subr.bf16.mxu0 0
    %1317 = vmatpush1.bf16.msra.mxu0 0
    %1318 = vmatprep.subr.bf16.mxu0 0
    %1319 = vmatpush1.bf16.msra.mxu0 0
    %1320 = vmatprep.subr.bf16.mxu0 0
    %1321 = vmatpush1.bf16.msra.mxu0 0
    %1322 = vmatprep.subr.bf16.mxu0 0
    %1323 = vmatpush1.bf16.msra.mxu0 0
    %1324 = vmatprep.subr.bf16.mxu0 0
    %1325 = vmatpush1.bf16.msra.mxu0 0
    %1326 = vmatprep.subr.bf16.mxu0 0
    %1327 = vmatpush1.bf16.msra.mxu0 0
    %1328 = vmatprep.subr.bf16.mxu0 0
    %1329 = vmatpush1.bf16.msra.mxu0 0
    %1330 = vmatprep.subr.bf16.mxu0 0
    %1331 = vmatpush1.bf16.msra.mxu0 0
    %1332 = vmatprep.subr.bf16.mxu0 0
    %1333 = vmatpush1.bf16.msra.mxu0 0
    %1334 = vmatprep.mubr.bf16.mxu0 0
    %1335 = vmatmul.mubr.bf16.gmra.mrb[0].mxu0 %v1300
    %v1336 = vpop.f32.mrb[0].mxu0
    %v1337 = vadd.f32 0.0, %v1336
    %v1338 = vpop.f32.mrb[0].mxu0
    %v1339 = vpop.f32.mrb[0].mxu0
    %v1340 = vpop.f32.mrb[0].mxu0
    %1341 = vdwg.mxu0
    %1344 = vrot.lane.b32.xlu0 %v1102, 8
    %v1345 = vpop.permute.xlu0 %1344
    %1346 = vrot.lane.b32.xlu0 %v1149, 8
    %v1347 = vpop.permute.xlu0 %1346
    %1352 = vrot.lane.b32.xlu0 %v1196, 16
    %v1353 = vpop.permute.xlu0 %1352
    %1354 = vrot.lane.b32.xlu0 %v1243, 16
    %v1355 = vpop.permute.xlu0 %1354
    %1360 = vrot.lane.b32.xlu0 %v1290, 24
    %v1361 = vpop.permute.xlu0 %1360
    %1362 = vrot.lane.b32.xlu0 %v1337, 24
    %v1363 = vpop.permute.xlu0 %1362
    %v1366 = vsel %vm463, %v1008, %v1345
    %v1367 = vsel %vm463, %v1055, %v1347
    %v1368 = vsel %vm861, %v1366, %v1353
    %v1369 = vsel %vm861, %v1367, %v1355
    %vm1370 = vcmask 195584
    %v1371 = vsel %vm1370, %v1368, %v1361
    %v1372 = vsel %vm1370, %v1369, %v1363
    %v1373 = vld [vmem:[%s7] sm:$0xf]
    %v1374 = vld [vmem:[%s7 + $0x4] sm:$0xf]
    %v1375 = vld [vmem:[%s7 + $0x8] sm:$0xf]
    %v1376 = vld [vmem:[%s7 + $0xc] sm:$0xf]
    %v1377 = vpack.c.bf16 %v1372, %v1371
    %v1382 = vunpack.c.l.b16 %v1373
    %v1383 = vunpack.c.l.b16 %v1374
    %v1384 = vunpack.c.l.b16 %v1375
    %v1385 = vunpack.c.l.b16 %v1376
    %v1386 = vpack.c.b16 %v1383, %v1382
    %v1387 = vpack.c.b16 %v1385, %v1384
    %v1391 = vsel %vm64, %v1377, 0
    %1393 = vmatprep.subr.bf16.mxu0 0
    %1394 = vmatpush1.bf16.msra.mxu0 %v1386
    %1395 = vmatprep.subr.bf16.mxu0 0
    %1396 = vmatpush1.bf16.msra.mxu0 %v1387
    %1397 = vmatprep.subr.bf16.mxu0 0
    %1398 = vmatpush1.bf16.msra.mxu0 0
    %1399 = vmatprep.subr.bf16.mxu0 0
    %1400 = vmatpush1.bf16.msra.mxu0 0
    %1401 = vmatprep.subr.bf16.mxu0 0
    %1402 = vmatpush1.bf16.msra.mxu0 0
    %1403 = vmatprep.subr.bf16.mxu0 0
    %1404 = vmatpush1.bf16.msra.mxu0 0
    %1405 = vmatprep.subr.bf16.mxu0 0
    %1406 = vmatpush1.bf16.msra.mxu0 0
    %1407 = vmatprep.subr.bf16.mxu0 0
    %1408 = vmatpush1.bf16.msra.mxu0 0
    %1409 = vmatprep.subr.bf16.mxu0 0
    %1410 = vmatpush1.bf16.msra.mxu0 0
    %1411 = vmatprep.subr.bf16.mxu0 0
    %1412 = vmatpush1.bf16.msra.mxu0 0
    %1413 = vmatprep.subr.bf16.mxu0 0
    %1414 = vmatpush1.bf16.msra.mxu0 0
    %1415 = vmatprep.subr.bf16.mxu0 0
    %1416 = vmatpush1.bf16.msra.mxu0 0
    %1417 = vmatprep.subr.bf16.mxu0 0
    %1418 = vmatpush1.bf16.msra.mxu0 0
    %1419 = vmatprep.subr.bf16.mxu0 0
    %1420 = vmatpush1.bf16.msra.mxu0 0
    %1421 = vmatprep.subr.bf16.mxu0 0
    %1422 = vmatpush1.bf16.msra.mxu0 0
    %1423 = vmatprep.subr.bf16.mxu0 0
    %1424 = vmatpush1.bf16.msra.mxu0 0
    %1425 = vmatprep.mubr.bf16.mxu0 0
    %1426 = vmatmul.mubr.bf16.gmra.mrb[0].mxu0 %v1391
    %v1427 = vpop.f32.mrb[0].mxu0
    %v1428 = vadd.f32 0.0, %v1427
    %v1429 = vpop.f32.mrb[0].mxu0
    %v1430 = vpop.f32.mrb[0].mxu0
    %v1431 = vadd.f32 0.0, %v1430
    %v1432 = vpop.f32.mrb[0].mxu0
    %1433 = vdwg.mxu0
    %v1434 = vadd.f32 %v106, %v1428
    %v1435 = vadd.f32 %v107, %v1431
    %v1436 = vld [vmem:[%s8] sm:$0x1]
    %v1438 = vlaneseq
    %v1439 = vshrl.u32 %v1438, 7
    %v1440 = vsub.s32 0, %v1439
    %v1441 = vrot.slane %v1436, %v1440
    %v1443 = vadd.f32 %v1434, %v1441
    %v1444 = vadd.f32 %v1435, %v1441
    %v1445 = vld [vmem:[%s9] sm:$0x1]
    %v1446 = vld [vmem:[%s10] sm:$0x1]
    %v1447 = vsel %vm64, %v1443, 0.0
    %1448 = vadd.xlane.f32.xlu0 %v1447
    %v1449 = vpop.xlane.xlu0 %1448
    %v1450 = vsel %vm64, %v1444, 0.0
    %1451 = vadd.xlane.f32.xlu0 %v1450
    %v1452 = vpop.xlane.xlu0 %1451
    %v1453 = vmul.f32 %v1449, %v71
    %v1454 = vmul.f32 %v1452, %v71
    %v1455 = vsub.f32 %v1443, %v1453
    %v1456 = vsub.f32 %v1444, %v1454
    %v1457 = vmul.f32 %v1455, %v1455
    %v1458 = vmul.f32 %v1456, %v1456
    %v1459 = vsel %vm64, %v1457, 0.0
    %1460 = vadd.xlane.f32.xlu0 %v1459
    %v1461 = vpop.xlane.xlu0 %1460
    %v1462 = vsel %vm64, %v1458, 0.0
    %1463 = vadd.xlane.f32.xlu0 %v1462
    %v1464 = vpop.xlane.xlu0 %1463
    %v1465 = vmul.f32 %v1461, %v71
    %v1466 = vmul.f32 %v1464, %v71
    %v1467 = vadd.f32 %v1465, 1e-05
    %v1468 = vadd.f32 %v1466, 1e-05
    %v1469 = vrsqrt.pop %v1467
    %v1470 = vrsqrt.pop %v1468
    %v1471 = vmul.f32 %v1455, %v1469
    %v1472 = vmul.f32 %v1456, %v1470
    %v1474 = vlaneseq
    %v1475 = vshrl.u32 %v1474, 7
    %v1476 = vsub.s32 0, %v1475
    %v1477 = vrot.slane %v1445, %v1476
    %v1479 = vmul.f32 %v1471, %v1477
    %v1480 = vmul.f32 %v1472, %v1477
    %v1482 = vlaneseq
    %v1483 = vshrl.u32 %v1482, 7
    %v1484 = vsub.s32 0, %v1483
    %v1485 = vrot.slane %v1446, %v1484
    %v1487 = vadd.f32 %v1479, %v1485
    %v1488 = vadd.f32 %v1480, %v1485
    %v1489 = vld [vmem:[%s11] sm:$0xf]
    %v1490 = vld [vmem:[%s11 + $0x4] sm:$0xf]
    %v1491 = vld [vmem:[%s11 + $0x8] sm:$0xf]
    %v1492 = vld [vmem:[%s11 + $0xc] sm:$0xf]
    %v1493 = vpack.c.bf16 %v1488, %v1487
    %v1494 = vld [vmem:[%s12] sm:$0x1]
    %v1496 = vlaneseq
    %v1497 = vshrl.u32 %v1496, 7
    %v1498 = vsub.s32 0, %v1497
    %v1499 = vrot.slane %v1494, %v1498
    %v1505 = vunpack.c.l.b16 %v1489
    %v1506 = vunpack.c.l.b16 %v1490
    %v1507 = vunpack.c.l.b16 %v1491
    %v1508 = vunpack.c.l.b16 %v1492
    %v1509 = vpack.c.b16 %v1506, %v1505
    %v1510 = vpack.c.b16 %v1508, %v1507
    %v1514 = vsel %vm64, %v1493, 0
    %1516 = vmatprep.subr.bf16.mxu0 0
    %1517 = vmatpush1.bf16.msra.mxu0 %v1509
    %1518 = vmatprep.subr.bf16.mxu0 0
    %1519 = vmatpush1.bf16.msra.mxu0 %v1510
    %1520 = vmatprep.subr.bf16.mxu0 0
    %1521 = vmatpush1.bf16.msra.mxu0 0
    %1522 = vmatprep.subr.bf16.mxu0 0
    %1523 = vmatpush1.bf16.msra.mxu0 0
    %1524 = vmatprep.subr.bf16.mxu0 0
    %1525 = vmatpush1.bf16.msra.mxu0 0
    %1526 = vmatprep.subr.bf16.mxu0 0
    %1527 = vmatpush1.bf16.msra.mxu0 0
    %1528 = vmatprep.subr.bf16.mxu0 0
    %1529 = vmatpush1.bf16.msra.mxu0 0
    %1530 = vmatprep.subr.bf16.mxu0 0
    %1531 = vmatpush1.bf16.msra.mxu0 0
    %1532 = vmatprep.subr.bf16.mxu0 0
    %1533 = vmatpush1.bf16.msra.mxu0 0
    %1534 = vmatprep.subr.bf16.mxu0 0
    %1535 = vmatpush1.bf16.msra.mxu0 0
    %1536 = vmatprep.subr.bf16.mxu0 0
    %1537 = vmatpush1.bf16.msra.mxu0 0
    %1538 = vmatprep.subr.bf16.mxu0 0
    %1539 = vmatpush1.bf16.msra.mxu0 0
    %1540 = vmatprep.subr.bf16.mxu0 0
    %1541 = vmatpush1.bf16.msra.mxu0 0
    %1542 = vmatprep.subr.bf16.mxu0 0
    %1543 = vmatpush1.bf16.msra.mxu0 0
    %1544 = vmatprep.subr.bf16.mxu0 0
    %1545 = vmatpush1.bf16.msra.mxu0 0
    %1546 = vmatprep.subr.bf16.mxu0 0
    %1547 = vmatpush1.bf16.msra.mxu0 0
    %1548 = vmatprep.mubr.bf16.mxu0 0
    %1549 = vmatmul.mubr.bf16.gmra.mrb[0].mxu0 %v1514
    %v1550 = vpop.f32.mrb[0].mxu0
    %v1551 = vadd.f32 %v1499, %v1550
    %v1552 = vpop.f32.mrb[0].mxu0
    %v1553 = vpop.f32.mrb[0].mxu0
    %v1554 = vadd.f32 %v1499, %v1553
    %v1555 = vpop.f32.mrb[0].mxu0
    %1556 = vdwg.mxu0
    %v1557 = vmul.f32 %v1551, 0.5
    %v1558 = vmul.f32 %v1554, 0.5
    %v1559 = vmul.f32 %v1551, 0.044715
    %v1560 = vmul.f32 %v1554, 0.044715
    %v1561 = vmul.f32 %v1559, %v1551
    %v1562 = vmul.f32 %v1560, %v1554
    %v1563 = vmul.f32 %v1561, %v1551
    %v1564 = vmul.f32 %v1562, %v1554
    %v1565 = vadd.f32 %v1551, %v1563
    %v1566 = vadd.f32 %v1554, %v1564
    %v1567 = vmul.f32 %v1565, 0.7978846
    %v1568 = vmul.f32 %v1566, 0.7978846
    %v1569 = vtanh.pop %v1567
    %v1570 = vtanh.pop %v1568
    %v1571 = vadd.f32 %v1569, 1.0
    %v1572 = vadd.f32 %v1570, 1.0
    %v1573 = vmul.f32 %v1557, %v1571
    %v1574 = vmul.f32 %v1558, %v1572
    %v1575 = vld [vmem:[%s13] sm:$0xf]
    %v1576 = vld [vmem:[%s13 + $0x4] sm:$0xf]
    %v1577 = vld [vmem:[%s13 + $0x8] sm:$0xf]
    %v1578 = vld [vmem:[%s13 + $0xc] sm:$0xf]
    %v1579 = vld [vmem:[%s13 + $0x10] sm:$0xf]
    %v1580 = vld [vmem:[%s13 + $0x14] sm:$0xf]
    %v1581 = vld [vmem:[%s13 + $0x18] sm:$0xf]
    %v1582 = vld [vmem:[%s13 + $0x1c] sm:$0xf]
    %v1583 = vpack.c.bf16 %v1574, %v1573
    %v1592 = vunpack.c.l.b16 %v1575
    %v1593 = vunpack.c.l.b16 %v1576
    %v1594 = vunpack.c.l.b16 %v1577
    %v1595 = vunpack.c.l.b16 %v1578
    %v1596 = vunpack.c.l.b16 %v1579
    %v1597 = vunpack.c.l.b16 %v1580
    %v1598 = vunpack.c.l.b16 %v1581
    %v1599 = vunpack.c.l.b16 %v1582
    %v1600 = vpack.c.b16 %v1593, %v1592
    %v1601 = vpack.c.b16 %v1595, %v1594
    %v1602 = vpack.c.b16 %v1597, %v1596
    %v1603 = vpack.c.b16 %v1599, %v1598
    %vm1608 = vcmask 523264
    %v1610 = vsel %vm1608, %v1583, 0
    %1612 = vmatprep.subr.bf16.mxu0 0
    %1613 = vmatpush1.bf16.msra.mxu0 %v1600
    %1614 = vmatprep.subr.bf16.mxu0 0
    %1615 = vmatpush1.bf16.msra.mxu0 %v1601
    %1616 = vmatprep.subr.bf16.mxu0 0
    %1617 = vmatpush1.bf16.msra.mxu0 %v1602
    %1618 = vmatprep.subr.bf16.mxu0 0
    %1619 = vmatpush1.bf16.msra.mxu0 %v1603
    %1620 = vmatprep.subr.bf16.mxu0 0
    %1621 = vmatpush1.bf16.msra.mxu0 0
    %1622 = vmatprep.subr.bf16.mxu0 0
    %1623 = vmatpush1.bf16.msra.mxu0 0
    %1624 = vmatprep.subr.bf16.mxu0 0
    %1625 = vmatpush1.bf16.msra.mxu0 0
    %1626 = vmatprep.subr.bf16.mxu0 0
    %1627 = vmatpush1.bf16.msra.mxu0 0
    %1628 = vmatprep.subr.bf16.mxu0 0
    %1629 = vmatpush1.bf16.msra.mxu0 0
    %1630 = vmatprep.subr.bf16.mxu0 0
    %1631 = vmatpush1.bf16.msra.mxu0 0
    %1632 = vmatprep.subr.bf16.mxu0 0
    %1633 = vmatpush1.bf16.msra.mxu0 0
    %1634 = vmatprep.subr.bf16.mxu0 0
    %1635 = vmatpush1.bf16.msra.mxu0 0
    %1636 = vmatprep.subr.bf16.mxu0 0
    %1637 = vmatpush1.bf16.msra.mxu0 0
    %1638 = vmatprep.subr.bf16.mxu0 0
    %1639 = vmatpush1.bf16.msra.mxu0 0
    %1640 = vmatprep.subr.bf16.mxu0 0
    %1641 = vmatpush1.bf16.msra.mxu0 0
    %1642 = vmatprep.subr.bf16.mxu0 0
    %1643 = vmatpush1.bf16.msra.mxu0 0
    %1644 = vmatprep.mubr.bf16.mxu0 0
    %1645 = vmatmul.mubr.bf16.gmra.mrb[0].mxu0 %v1610
    %v1646 = vpop.f32.mrb[0].mxu0
    %v1647 = vadd.f32 0.0, %v1646
    %v1648 = vpop.f32.mrb[0].mxu0
    %v1649 = vpop.f32.mrb[0].mxu0
    %v1650 = vadd.f32 0.0, %v1649
    %v1651 = vpop.f32.mrb[0].mxu0
    %1652 = vdwg.mxu0
    %v1653 = vadd.f32 %v1443, %v1647
    %v1654 = vadd.f32 %v1444, %v1650
    %v1655 = vld [vmem:[%s14] sm:$0x1]
    %v1657 = vlaneseq
    %v1658 = vshrl.u32 %v1657, 7
    %v1659 = vsub.s32 0, %v1658
    %v1660 = vrot.slane %v1655, %v1659
    %v1662 = vadd.f32 %v1653, %v1660
    %v1663 = vadd.f32 %v1654, %v1660
    %1664 = vst.msk [vmem:[#allocation2] sm:$0xff] %vm64, %v1662
    %1665 = vst.msk [vmem:[#allocation2 + $0x8] sm:$0xff] %vm64, %v1663
    // Predicated region
    $region62: #{cablock_forward.1} parent=1 // pred_check
      _
    $region63: #{cablock_forward.1} parent=1 // pred_check_branch
      %1667 = sbr.rel (0) target = $region65
    $region64: #{cablock_forward.1} parent=1 // pred_region
      %s1669 = ssub.s32 256, 256
      %1670 = vsyncadd [#allocation3], %s1669
      %s1671 = sshll.u32 [#allocation2], 4
      %s1672 = int_to_ptr.vmem [resolvable:$true] %s1671
      %1677 = dma.vmem_to_hbm [thread:$0]  %s1672, 256, %s15, [#allocation3], 128, 128, 8
    $region65: #{cablock_forward.1} parent=1 // pred_fallthru
      _
    // Predicated region
    $region66: #{cablock_forward.1} parent=1 // pred_check
      _
    $region67: #{cablock_forward.1} parent=1 // pred_check_branch
      %1679 = sbr.rel (0) target = $region69
    $region68: #{cablock_forward.1} parent=1 // pred_region
      %1680 = dma.done [#allocation3], 256
    $region69: #{cablock_forward.1} parent=1 // pred_fallthru
      _
    %1681 = vsyncpa [#allocation3], 1

</llo_original>
